<compile_context>
chip_gen: v7x
topology: tpu7x:2x2x1
jax: 0.10.0
libtpu: 0.0.40
codegen_flags: <defaults>
</compile_context>

<pallas_src>
import jax
import jax.numpy as jnp
from jax import lax
from jax.experimental import pallas as pl
from jax.experimental.pallas import tpu as pltpu

LN_EPS = 1e-5          # PyTorch nn.LayerNorm default
NEG_BIG = -1e30        # mask value for padded class lanes (finite -> no inf-inf NaNs)


def _layernorm_onepass(h, gamma, beta):
    """LayerNorm with E[h], E[h^2] computed as two independent reductions."""
    n = h.shape[-1]
    inv_n = 1.0 / n
    mu = jnp.sum(h, axis=-1, keepdims=True) * inv_n
    ms = jnp.sum(h * h, axis=-1, keepdims=True) * inv_n
    var = ms - mu * mu
    return (h - mu) * lax.rsqrt(var + LN_EPS) * gamma + beta


def _layernorm_ref(h, gamma, beta):
    mu = jnp.mean(h, axis=-1, keepdims=True)
    var = jnp.mean((h - mu) ** 2, axis=-1, keepdims=True)
    return (h - mu) * lax.rsqrt(var + LN_EPS) * gamma + beta


def mlp_kernel(x_ref, w1_ref, w2_ref, w3_ref, w4_ref, w5t_ref, vec_ref, b5c_ref, o_ref):
    # Consolidated 1-row params (biases / LayerNorm gamma,beta), lane-padded to 128.
    b1 = vec_ref[0:1, :]
    g1 = vec_ref[1:2, :]
    be1 = vec_ref[2:3, :]
    b2 = vec_ref[3:4, :64]
    b3 = vec_ref[4:5, :32]
    b4 = vec_ref[5:6, :16]
    g4 = vec_ref[6:7, :16]
    be4 = vec_ref[7:8, :16]

    x = x_ref[...]  # (tm, D) f32

    # Linear(D,128) -> LayerNorm(128) -> ReLU -> Dropout(identity at inference)
    h = jnp.dot(x, w1_ref[...], preferred_element_type=jnp.float32) + b1
    h = _layernorm_onepass(h, g1, be1)
    h = jnp.maximum(h, 0.0)
    # TODO(synk): Dropout(0.3) matters only in training; treated as identity (eval semantics).

    # Linear(128,64) -> ReLU
    h = jnp.maximum(jnp.dot(h, w2_ref[...], preferred_element_type=jnp.float32) + b2, 0.0)
    # Linear(64,32) -> ReLU
    h = jnp.maximum(jnp.dot(h, w3_ref[...], preferred_element_type=jnp.float32) + b3, 0.0)
    # Linear(32,16) -> LayerNorm(16) -> ReLU
    h = jnp.dot(h, w4_ref[...], preferred_element_type=jnp.float32) + b4
    h = _layernorm_onepass(h, g4, be4)
    h = jnp.maximum(h, 0.0)  # (tm, 16)

    # Final Linear(16,3), computed class-major so the output stays lane-dense (batch on lanes):
    #   logits_t[n, m] = sum_k w5t[n, k] * h[m, k]      -> (128, tm)
    # (native "A @ B^T" MXU form; rows >= 3 of w5t are zero.)
    logits_t = lax.dot_general(
        w5t_ref[...], h, (((1,), (1,)), ((), ())), preferred_element_type=jnp.float32
    )
    logits_t = logits_t + b5c_ref[...]  # (128,1) bias column; padded rows carry -1e30

    # Softmax over the class (sublane) axis; padded rows contribute exp(-1e30 - m) == 0.
    m = jnp.max(logits_t, axis=0, keepdims=True)       # (1, tm)
    e = jnp.exp(logits_t - m)                          # (128, tm)
    denom = jnp.sum(e, axis=0, keepdims=True)          # (1, tm)
    inv = 1.0 / denom                                  # exact; tiny (1, tm) EUP work
    probs_t = e * inv
    o_ref[...] = probs_t[:3, :].astype(o_ref.dtype)    # (3, tm) lane-dense store


def _round_up(n, m):
    return -(-n // m) * m


def _choose_tm(batch):
    """Batch tile: big enough to amortize ~0.35us/grid-step, multiple of 128 when tiled
    (output lane axis), and grid >= 2 whenever batch > 128 for v7x's two TensorCores."""
    CAP = 2048
    if batch <= 128:
        return batch  # single block == full array (no (8,128) alignment constraint)
    return min(CAP, max(128, _round_up(pl.cdiv(batch, 2), 128)))


def mlp_forward(x, params, *, tm=None):
    """x: (B, input_dim) float32. Returns softmax probabilities (B, 3) float32."""
    B, D = x.shape
    if tm is None:
        tm = _choose_tm(B)

    (w1, b1, g1, be1, w2, b2, w3, b3, w4, b4, g4, be4, w5, b5) = params

    # Class-major final weight, lane-padded to 128 classes (rows >= 3 are zero).
    w5t = jnp.zeros((128, 16), jnp.float32).at[:3, :].set(w5.T)
    # Class bias as a (128, 1) column; padded rows get a large negative so softmax ignores them.
    b5c = jnp.full((128, 1), NEG_BIG, jnp.float32).at[:3, 0].set(b5.reshape(-1))

    # Consolidate the eight remaining 1-row vectors into one lane-padded (8, 128) operand.
    vec = jnp.zeros((8, 128), jnp.float32)
    for i, v in enumerate((b1, g1, be1, b2, b3, b4, g4, be4)):
        v = v.reshape(-1)
        vec = vec.at[i, : v.shape[0]].set(v)

    weights = (w1, w2, w3, w4)
    grid = (pl.cdiv(B, tm),)

    in_specs = [pl.BlockSpec((tm, D), lambda i: (i, 0))]
    in_specs += [pl.BlockSpec(w.shape, lambda i: (0, 0)) for w in weights]
    in_specs += [
        pl.BlockSpec(w5t.shape, lambda i: (0, 0)),
        pl.BlockSpec(vec.shape, lambda i: (0, 0)),
        pl.BlockSpec(b5c.shape, lambda i: (0, 0)),
    ]

    out_t = pl.pallas_call(
        mlp_kernel,
        out_shape=jax.ShapeDtypeStruct((3, B), jnp.float32),
        grid_spec=pltpu.PrefetchScalarGridSpec(
            num_scalar_prefetch=0,
            grid=grid,
            in_specs=in_specs,
            out_specs=pl.BlockSpec((3, tm), lambda i: (0, i)),
        ),
        compiler_params=pltpu.CompilerParams(
            dimension_semantics=("parallel",),
            vmem_limit_bytes=32 * 1024 * 1024,
        ),
    )(x, *weights, w5t, vec, b5c)

    # Present the PyTorch layout (B, 3).  This transpose touches only 12 B/row of output,
    # far cheaper than the masked (tm, 3) store epilogue it replaces.
    return out_t.T


def init_params(input_dim, key):
    """Deterministic init; weights stored as (in, out) for x @ W."""
    dims = [(input_dim, 128), (128, 64), (64, 32), (32, 16), (16, 3)]
    keys = jax.random.split(key, 2 * len(dims))
    ws, bs = [], []
    for idx, (fi, fo) in enumerate(dims):
        bound = 1.0 / jnp.sqrt(fi)
        w = jax.random.uniform(keys[2 * idx], (fi, fo), jnp.float32, -bound, bound)
        b = jax.random.uniform(keys[2 * idx + 1], (1, fo), jnp.float32, -bound, bound)
        ws.append(w)
        bs.append(b)
    # LayerNorm params (gamma=1, beta=0, PyTorch init)
    g1 = jnp.ones((1, 128), jnp.float32)
    be1 = jnp.zeros((1, 128), jnp.float32)
    g4 = jnp.ones((1, 16), jnp.float32)
    be4 = jnp.zeros((1, 16), jnp.float32)
    return (
        ws[0], bs[0], g1, be1,
        ws[1], bs[1],
        ws[2], bs[2],
        ws[3], bs[3], g4, be4,
        ws[4], bs[4],
    )


def reference_forward(x, params):
    """Pure-JAX reference (f32, textbook formulas) for correctness checks."""
    (w1, b1, g1, be1, w2, b2, w3, b3, w4, b4, g4, be4, w5, b5) = params
    h = x @ w1 + b1
    h = _layernorm_ref(h, g1, be1)
    h = jnp.maximum(h, 0.0)
    h = jnp.maximum(h @ w2 + b2, 0.0)
    h = jnp.maximum(h @ w3 + b3, 0.0)
    h = h @ w4 + b4
    h = _layernorm_ref(h, g4, be4)
    h = jnp.maximum(h, 0.0)
    logits = h @ w5 + b5
    return jax.nn.softmax(logits, axis=1)


if __name__ == "__main__":
    key = jax.random.PRNGKey(0)
    k_x, k_p = jax.random.split(key)

    input_dim = 32
    params = init_params(input_dim, k_p)

    # Case 1: small batch, single grid step (block == full array).
    batch = 64
    x = jax.random.normal(k_x, (batch, input_dim), jnp.float32)
    ref = reference_forward(x, params)
    out = jax.block_until_ready(mlp_forward(x, params))
    assert out.shape == (batch, 3)
    assert jnp.allclose(out, ref, atol=2e-3, rtol=2e-3), "kernel mismatch vs reference (B=64)"
    assert jnp.allclose(jnp.sum(out, axis=1), 1.0, atol=1e-3), "softmax rows must sum to ~1"

    # Case 2: ragged multi-step grid (B not divisible by tm) -> exercises clipped last-block
    # reads/writes and the 2-step "parallel" batch axis (v7x megacore path).
    batch2 = 200
    x2 = jax.random.normal(jax.random.fold_in(k_x, 1), (batch2, input_dim), jnp.float32)
    ref2 = reference_forward(x2, params)
    out2 = jax.block_until_ready(mlp_forward(x2, params, tm=128))
    assert out2.shape == (batch2, 3)
    assert jnp.allclose(out2, ref2, atol=2e-3, rtol=2e-3), "kernel mismatch vs reference (B=200)"
    assert jnp.allclose(jnp.sum(out2, axis=1), 1.0, atol=1e-3), "softmax rows must sum to ~1"

    print("KERNEL_OK")
</pallas_src>

<mosaic_0001>
module attributes {stable_mosaic.version = 11 : i64} {
  func.func @mlp_kernel(%arg0: i32, %arg1: memref<64x32xf32, #tpu.memory_space<vmem>>, %arg2: memref<32x128xf32, #tpu.memory_space<vmem>>, %arg3: memref<128x64xf32, #tpu.memory_space<vmem>>, %arg4: memref<64x32xf32, #tpu.memory_space<vmem>>, %arg5: memref<32x16xf32, #tpu.memory_space<vmem>>, %arg6: memref<128x16xf32, #tpu.memory_space<vmem>>, %arg7: memref<8x128xf32, #tpu.memory_space<vmem>>, %arg8: memref<128x1xf32, #tpu.memory_space<vmem>>, %arg9: memref<3x64xf32, #tpu.memory_space<vmem>>) attributes {dimension_semantics = [#tpu.dimension_semantics<parallel>], iteration_bounds = array<i64: 1>, scalar_prefetch = 0 : i64, scratch_operands = 0 : i64, tpu.core_type = #tpu.core_type<tc>, window_params = [{transform_indices = @transform_0, window_bounds = array<i64: 64, 32>}, {pipeline_mode = #tpu.pipeline_mode<synchronous>, transform_indices = @transform_1, window_bounds = array<i64: 32, 128>}, {pipeline_mode = #tpu.pipeline_mode<synchronous>, transform_indices = @transform_2, window_bounds = array<i64: 128, 64>}, {pipeline_mode = #tpu.pipeline_mode<synchronous>, transform_indices = @transform_3, window_bounds = array<i64: 64, 32>}, {pipeline_mode = #tpu.pipeline_mode<synchronous>, transform_indices = @transform_4, window_bounds = array<i64: 32, 16>}, {pipeline_mode = #tpu.pipeline_mode<synchronous>, transform_indices = @transform_5, window_bounds = array<i64: 128, 16>}, {pipeline_mode = #tpu.pipeline_mode<synchronous>, transform_indices = @transform_6, window_bounds = array<i64: 8, 128>}, {pipeline_mode = #tpu.pipeline_mode<synchronous>, transform_indices = @transform_7, window_bounds = array<i64: 128, 1>}, {transform_indices = @transform_8, window_bounds = array<i64: 3, 64>}]} {
    %c0 = arith.constant 0 : index
    %c0_0 = arith.constant 0 : index
    %0 = vector.load %arg7[%c0, %c0_0] : memref<8x128xf32, #tpu.memory_space<vmem>>, vector<1x128xf32>
    %c1 = arith.constant 1 : index
    %c0_1 = arith.constant 0 : index
    %1 = vector.load %arg7[%c1, %c0_1] : memref<8x128xf32, #tpu.memory_space<vmem>>, vector<1x128xf32>
    %c2 = arith.constant 2 : index
    %c0_2 = arith.constant 0 : index
    %2 = vector.load %arg7[%c2, %c0_2] : memref<8x128xf32, #tpu.memory_space<vmem>>, vector<1x128xf32>
    %c3 = arith.constant 3 : index
    %c0_3 = arith.constant 0 : index
    %3 = vector.load %arg7[%c3, %c0_3] : memref<8x128xf32, #tpu.memory_space<vmem>>, vector<1x64xf32>
    %c4 = arith.constant 4 : index
    %c0_4 = arith.constant 0 : index
    %4 = vector.load %arg7[%c4, %c0_4] : memref<8x128xf32, #tpu.memory_space<vmem>>, vector<1x32xf32>
    %c5 = arith.constant 5 : index
    %c0_5 = arith.constant 0 : index
    %5 = vector.load %arg7[%c5, %c0_5] : memref<8x128xf32, #tpu.memory_space<vmem>>, vector<1x16xf32>
    %c6 = arith.constant 6 : index
    %c0_6 = arith.constant 0 : index
    %6 = vector.load %arg7[%c6, %c0_6] : memref<8x128xf32, #tpu.memory_space<vmem>>, vector<1x16xf32>
    %c7 = arith.constant 7 : index
    %c0_7 = arith.constant 0 : index
    %7 = vector.load %arg7[%c7, %c0_7] : memref<8x128xf32, #tpu.memory_space<vmem>>, vector<1x16xf32>
    %c0_8 = arith.constant 0 : index
    %c0_9 = arith.constant 0 : index
    %8 = vector.load %arg1[%c0_8, %c0_9] : memref<64x32xf32, #tpu.memory_space<vmem>>, vector<64x32xf32>
    %c0_10 = arith.constant 0 : index
    %c0_11 = arith.constant 0 : index
    %9 = vector.load %arg2[%c0_10, %c0_11] : memref<32x128xf32, #tpu.memory_space<vmem>>, vector<32x128xf32>
    %cst = arith.constant dense<0.000000e+00> : vector<64x128xf32>
    %10 = tpu.matmul %8, %9, %cst {dimension_numbers = #tpu.dot_dimension_numbers<[1], [0], [0], [1], [0, 0, 1, 1], [], []>} : vector<64x32xf32>, vector<32x128xf32>, vector<64x128xf32> -> vector<64x128xf32>
    %11 = vector.broadcast %0 : vector<1x128xf32> to vector<64x128xf32>
    %12 = arith.addf %10, %11 : vector<64x128xf32>
    %cst_12 = arith.constant dense<0.000000e+00> : vector<64xf32>
    %13 = vector.multi_reduction <add>, %12, %cst_12 [1] : vector<64x128xf32> to vector<64xf32>
    %14 = vector.shape_cast %13 : vector<64xf32> to vector<64x1xf32>
    %cst_13 = arith.constant 7.812500e-03 : f32
    %15 = vector.broadcast %cst_13 : f32 to vector<64x1xf32>
    %16 = arith.mulf %14, %15 : vector<64x1xf32>
    %17 = arith.mulf %12, %12 : vector<64x128xf32>
    %cst_14 = arith.constant dense<0.000000e+00> : vector<64xf32>
    %18 = vector.multi_reduction <add>, %17, %cst_14 [1] : vector<64x128xf32> to vector<64xf32>
    %19 = vector.shape_cast %18 : vector<64xf32> to vector<64x1xf32>
    %cst_15 = arith.constant 7.812500e-03 : f32
    %20 = vector.broadcast %cst_15 : f32 to vector<64x1xf32>
    %21 = arith.mulf %19, %20 : vector<64x1xf32>
    %22 = arith.mulf %16, %16 : vector<64x1xf32>
    %23 = arith.subf %21, %22 : vector<64x1xf32>
    %24 = vector.broadcast %16 : vector<64x1xf32> to vector<64x128xf32>
    %25 = arith.subf %12, %24 : vector<64x128xf32>
    %cst_16 = arith.constant 9.99999974E-6 : f32
    %26 = vector.broadcast %cst_16 : f32 to vector<64x1xf32>
    %27 = arith.addf %23, %26 : vector<64x1xf32>
    %28 = math.rsqrt %27 : vector<64x1xf32>
    %29 = vector.broadcast %28 : vector<64x1xf32> to vector<64x128xf32>
    %30 = arith.mulf %25, %29 : vector<64x128xf32>
    %31 = vector.broadcast %1 : vector<1x128xf32> to vector<64x128xf32>
    %32 = arith.mulf %30, %31 : vector<64x128xf32>
    %33 = vector.broadcast %2 : vector<1x128xf32> to vector<64x128xf32>
    %34 = arith.addf %32, %33 : vector<64x128xf32>
    %cst_17 = arith.constant 0.000000e+00 : f32
    %35 = vector.broadcast %cst_17 : f32 to vector<64x128xf32>
    %36 = arith.maximumf %34, %35 : vector<64x128xf32>
    %c0_18 = arith.constant 0 : index
    %c0_19 = arith.constant 0 : index
    %37 = vector.load %arg3[%c0_18, %c0_19] : memref<128x64xf32, #tpu.memory_space<vmem>>, vector<128x64xf32>
    %cst_20 = arith.constant dense<0.000000e+00> : vector<64x64xf32>
    %38 = tpu.matmul %36, %37, %cst_20 {dimension_numbers = #tpu.dot_dimension_numbers<[1], [0], [0], [1], [0, 0, 1, 1], [], []>} : vector<64x128xf32>, vector<128x64xf32>, vector<64x64xf32> -> vector<64x64xf32>
    %39 = vector.broadcast %3 : vector<1x64xf32> to vector<64x64xf32>
    %40 = arith.addf %38, %39 : vector<64x64xf32>
    %cst_21 = arith.constant 0.000000e+00 : f32
    %41 = vector.broadcast %cst_21 : f32 to vector<64x64xf32>
    %42 = arith.maximumf %40, %41 : vector<64x64xf32>
    %c0_22 = arith.constant 0 : index
    %c0_23 = arith.constant 0 : index
    %43 = vector.load %arg4[%c0_22, %c0_23] : memref<64x32xf32, #tpu.memory_space<vmem>>, vector<64x32xf32>
    %cst_24 = arith.constant dense<0.000000e+00> : vector<64x32xf32>
    %44 = tpu.matmul %42, %43, %cst_24 {dimension_numbers = #tpu.dot_dimension_numbers<[1], [0], [0], [1], [0, 0, 1, 1], [], []>} : vector<64x64xf32>, vector<64x32xf32>, vector<64x32xf32> -> vector<64x32xf32>
    %45 = vector.broadcast %4 : vector<1x32xf32> to vector<64x32xf32>
    %46 = arith.addf %44, %45 : vector<64x32xf32>
    %cst_25 = arith.constant 0.000000e+00 : f32
    %47 = vector.broadcast %cst_25 : f32 to vector<64x32xf32>
    %48 = arith.maximumf %46, %47 : vector<64x32xf32>
    %c0_26 = arith.constant 0 : index
    %c0_27 = arith.constant 0 : index
    %49 = vector.load %arg5[%c0_26, %c0_27] : memref<32x16xf32, #tpu.memory_space<vmem>>, vector<32x16xf32>
    %cst_28 = arith.constant dense<0.000000e+00> : vector<64x16xf32>
    %50 = tpu.matmul %48, %49, %cst_28 {dimension_numbers = #tpu.dot_dimension_numbers<[1], [0], [0], [1], [0, 0, 1, 1], [], []>} : vector<64x32xf32>, vector<32x16xf32>, vector<64x16xf32> -> vector<64x16xf32>
    %51 = vector.broadcast %5 : vector<1x16xf32> to vector<64x16xf32>
    %52 = arith.addf %50, %51 : vector<64x16xf32>
    %cst_29 = arith.constant dense<0.000000e+00> : vector<64xf32>
    %53 = vector.multi_reduction <add>, %52, %cst_29 [1] : vector<64x16xf32> to vector<64xf32>
    %54 = vector.shape_cast %53 : vector<64xf32> to vector<64x1xf32>
    %cst_30 = arith.constant 6.250000e-02 : f32
    %55 = vector.broadcast %cst_30 : f32 to vector<64x1xf32>
    %56 = arith.mulf %54, %55 : vector<64x1xf32>
    %57 = arith.mulf %52, %52 : vector<64x16xf32>
    %cst_31 = arith.constant dense<0.000000e+00> : vector<64xf32>
    %58 = vector.multi_reduction <add>, %57, %cst_31 [1] : vector<64x16xf32> to vector<64xf32>
    %59 = vector.shape_cast %58 : vector<64xf32> to vector<64x1xf32>
    %cst_32 = arith.constant 6.250000e-02 : f32
    %60 = vector.broadcast %cst_32 : f32 to vector<64x1xf32>
    %61 = arith.mulf %59, %60 : vector<64x1xf32>
    %62 = arith.mulf %56, %56 : vector<64x1xf32>
    %63 = arith.subf %61, %62 : vector<64x1xf32>
    %64 = vector.broadcast %56 : vector<64x1xf32> to vector<64x16xf32>
    %65 = arith.subf %52, %64 : vector<64x16xf32>
    %cst_33 = arith.constant 9.99999974E-6 : f32
    %66 = vector.broadcast %cst_33 : f32 to vector<64x1xf32>
    %67 = arith.addf %63, %66 : vector<64x1xf32>
    %68 = math.rsqrt %67 : vector<64x1xf32>
    %69 = vector.broadcast %68 : vector<64x1xf32> to vector<64x16xf32>
    %70 = arith.mulf %65, %69 : vector<64x16xf32>
    %71 = vector.broadcast %6 : vector<1x16xf32> to vector<64x16xf32>
    %72 = arith.mulf %70, %71 : vector<64x16xf32>
    %73 = vector.broadcast %7 : vector<1x16xf32> to vector<64x16xf32>
    %74 = arith.addf %72, %73 : vector<64x16xf32>
    %cst_34 = arith.constant 0.000000e+00 : f32
    %75 = vector.broadcast %cst_34 : f32 to vector<64x16xf32>
    %76 = arith.maximumf %74, %75 : vector<64x16xf32>
    %c0_35 = arith.constant 0 : index
    %c0_36 = arith.constant 0 : index
    %77 = vector.load %arg6[%c0_35, %c0_36] : memref<128x16xf32, #tpu.memory_space<vmem>>, vector<128x16xf32>
    %cst_37 = arith.constant dense<0.000000e+00> : vector<128x64xf32>
    %78 = tpu.matmul %77, %76, %cst_37 {dimension_numbers = #tpu.dot_dimension_numbers<[1], [1], [0], [0], [0, 0, 1, 0], [], []>} : vector<128x16xf32>, vector<64x16xf32>, vector<128x64xf32> -> vector<128x64xf32>
    %c0_38 = arith.constant 0 : index
    %c0_39 = arith.constant 0 : index
    %79 = vector.load %arg8[%c0_38, %c0_39] : memref<128x1xf32, #tpu.memory_space<vmem>>, vector<128x1xf32>
    %80 = vector.broadcast %79 : vector<128x1xf32> to vector<128x64xf32>
    %81 = arith.addf %78, %80 : vector<128x64xf32>
    %cst_40 = arith.constant dense<0xFF800000> : vector<64xf32>
    %82 = vector.multi_reduction <maximumf>, %81, %cst_40 [0] : vector<128x64xf32> to vector<64xf32>
    %83 = vector.shape_cast %82 : vector<64xf32> to vector<1x64xf32>
    %84 = vector.broadcast %83 : vector<1x64xf32> to vector<128x64xf32>
    %85 = arith.subf %81, %84 : vector<128x64xf32>
    %86 = math.exp %85 : vector<128x64xf32>
    %cst_41 = arith.constant dense<0.000000e+00> : vector<64xf32>
    %87 = vector.multi_reduction <add>, %86, %cst_41 [0] : vector<128x64xf32> to vector<64xf32>
    %88 = vector.shape_cast %87 : vector<64xf32> to vector<1x64xf32>
    %cst_42 = arith.constant 1.000000e+00 : f32
    %89 = vector.broadcast %cst_42 : f32 to vector<1x64xf32>
    %90 = arith.divf %89, %88 : vector<1x64xf32>
    %91 = vector.broadcast %90 : vector<1x64xf32> to vector<128x64xf32>
    %92 = arith.mulf %86, %91 : vector<128x64xf32>
    %93 = vector.extract_strided_slice %92 {offsets = [0, 0], sizes = [3, 64], strides = [1, 1]} : vector<128x64xf32> to vector<3x64xf32>
    %c0_43 = arith.constant 0 : index
    %c0_44 = arith.constant 0 : index
    %94 = vector.load %arg9[%c0_43, %c0_44] : memref<3x64xf32, #tpu.memory_space<vmem>>, vector<3x64xf32>
    tpu.vector_store %arg9[%c0_43, %c0_44], %93 {strides = array<i32>} : memref<3x64xf32, #tpu.memory_space<vmem>>, vector<3x64xf32>,
    return
  }
  func.func @transform_0(%arg0: i32) -> (i32, i32) {
    %c0_i32 = arith.constant 0 : i32
    %c0_i32_0 = arith.constant 0 : i32
    return %arg0, %c0_i32 : i32, i32
  }
  func.func @transform_1(%arg0: i32) -> (i32, i32) {
    %c0_i32 = arith.constant 0 : i32
    %c0_i32_0 = arith.constant 0 : i32
    %c0_i32_1 = arith.constant 0 : i32
    return %c0_i32, %c0_i32_0 : i32, i32
  }
  func.func @transform_2(%arg0: i32) -> (i32, i32) {
    %c0_i32 = arith.constant 0 : i32
    %c0_i32_0 = arith.constant 0 : i32
    %c0_i32_1 = arith.constant 0 : i32
    return %c0_i32, %c0_i32_0 : i32, i32
  }
  func.func @transform_3(%arg0: i32) -> (i32, i32) {
    %c0_i32 = arith.constant 0 : i32
    %c0_i32_0 = arith.constant 0 : i32
    %c0_i32_1 = arith.constant 0 : i32
    return %c0_i32, %c0_i32_0 : i32, i32
  }
  func.func @transform_4(%arg0: i32) -> (i32, i32) {
    %c0_i32 = arith.constant 0 : i32
    %c0_i32_0 = arith.constant 0 : i32
    %c0_i32_1 = arith.constant 0 : i32
    return %c0_i32, %c0_i32_0 : i32, i32
  }
  func.func @transform_5(%arg0: i32) -> (i32, i32) {
    %c0_i32 = arith.constant 0 : i32
    %c0_i32_0 = arith.constant 0 : i32
    %c0_i32_1 = arith.constant 0 : i32
    return %c0_i32, %c0_i32_0 : i32, i32
  }
  func.func @transform_6(%arg0: i32) -> (i32, i32) {
    %c0_i32 = arith.constant 0 : i32
    %c0_i32_0 = arith.constant 0 : i32
    %c0_i32_1 = arith.constant 0 : i32
    return %c0_i32, %c0_i32_0 : i32, i32
  }
  func.func @transform_7(%arg0: i32) -> (i32, i32) {
    %c0_i32 = arith.constant 0 : i32
    %c0_i32_0 = arith.constant 0 : i32
    %c0_i32_1 = arith.constant 0 : i32
    return %c0_i32, %c0_i32_0 : i32, i32
  }
  func.func @transform_8(%arg0: i32) -> (i32, i32) {
    %c0_i32 = arith.constant 0 : i32
    %c0_i32_0 = arith.constant 0 : i32
    return %c0_i32, %arg0 : i32, i32
  }
}

</mosaic_0001>

<llo_original>
// kernel: tpu_custom_call.1
$region0: #{tpu_custom_call.1}
  #allocation0 [shape = 'u32[]', space=smem, size = 0x4, offset = 0x4, fixed_abs, tag = 'smem constant byte address 0x4 - core index']
  #allocation1 [shape = 'u32[144,128]{1,0:T(1,128)}', space=vmem, size = 0x12000, scoped, tag = 'internal scratch']
  %s0 = inlined_call_operand.vmem [shape: f32[64,32], index: 0, kind: input, shape index: {}]
  %s1 = inlined_call_operand.vmem [shape: f32[32,128], index: 1, kind: input, shape index: {}]
  %s2 = inlined_call_operand.vmem [shape: f32[128,64], index: 2, kind: input, shape index: {}]
  %s3 = inlined_call_operand.vmem [shape: f32[64,32], index: 3, kind: input, shape index: {}]
  %s4 = inlined_call_operand.vmem [shape: f32[32,16], index: 4, kind: input, shape index: {}]
  %s5 = inlined_call_operand.vmem [shape: f32[128,16], index: 5, kind: input, shape index: {}]
  %s6 = inlined_call_operand.vmem [shape: f32[8,128], index: 6, kind: input, shape index: {}]
  %s7 = inlined_call_operand.vmem [shape: f32[128,1], index: 7, kind: input, shape index: {}]
  %s8 = inlined_call_operand.hbm [shape: f32[3,64], index: 8, kind: output, shape index: {}]
  %s9 = sld [smem:[#allocation0]]
  $region42: #{tpu_custom_call.1} parent=0
    _
  %s11 = ssub.s32 1, %s9
  %s12 = scalar_select 0, %s11, %s9
  $region1: #{tpu_custom_call.1} parent=0
    #allocation2 [shape = 'u8[2048]{0}', space=vmem, size = 0x800, scoped, tag = 'output window, operand 0, single buffered']
    #allocation3 [shape = 's32[1]{0}', space=sflag, size = 0x4, scoped, tag = 'scoped memory for tpu_custom_call.1']
    %13 = vsyncpa [#allocation3], 0
    // Predicated region
    $region2: #{tpu_custom_call.1} parent=1 // pred_check
      _
    $region3: #{tpu_custom_call.1} parent=1 // pred_check_branch
      %15 = sbr.rel (0) target = $region5
    $region4: #{tpu_custom_call.1} parent=1 // pred_region
      _
    $region5: #{tpu_custom_call.1} parent=1 // pred_fallthru
      _
    // Predicated region
    $region6: #{tpu_custom_call.1} parent=1 // pred_check
      _
    $region7: #{tpu_custom_call.1} parent=1 // pred_check_branch
      %17 = sbr.rel (0) target = $region9
    $region8: #{tpu_custom_call.1} parent=1 // pred_region
      _
    $region9: #{tpu_custom_call.1} parent=1 // pred_fallthru
      _
    // Predicated region
    $region10: #{tpu_custom_call.1} parent=1 // pred_check
      _
    $region11: #{tpu_custom_call.1} parent=1 // pred_check_branch
      %19 = sbr.rel (0) target = $region13
    $region12: #{tpu_custom_call.1} parent=1 // pred_region
      _
    $region13: #{tpu_custom_call.1} parent=1 // pred_fallthru
      _
    // Predicated region
    $region14: #{tpu_custom_call.1} parent=1 // pred_check
      _
    $region15: #{tpu_custom_call.1} parent=1 // pred_check_branch
      %21 = sbr.rel (0) target = $region17
    $region16: #{tpu_custom_call.1} parent=1 // pred_region
      _
    $region17: #{tpu_custom_call.1} parent=1 // pred_fallthru
      _
    // Predicated region
    $region18: #{tpu_custom_call.1} parent=1 // pred_check
      _
    $region19: #{tpu_custom_call.1} parent=1 // pred_check_branch
      %23 = sbr.rel (0) target = $region21
    $region20: #{tpu_custom_call.1} parent=1 // pred_region
      _
    $region21: #{tpu_custom_call.1} parent=1 // pred_fallthru
      _
    // Predicated region
    $region22: #{tpu_custom_call.1} parent=1 // pred_check
      _
    $region23: #{tpu_custom_call.1} parent=1 // pred_check_branch
      %25 = sbr.rel (0) target = $region25
    $region24: #{tpu_custom_call.1} parent=1 // pred_region
      _
    $region25: #{tpu_custom_call.1} parent=1 // pred_fallthru
      _
    // Predicated region
    $region26: #{tpu_custom_call.1} parent=1 // pred_check
      _
    $region27: #{tpu_custom_call.1} parent=1 // pred_check_branch
      %27 = sbr.rel (0) target = $region29
    $region28: #{tpu_custom_call.1} parent=1 // pred_region
      _
    $region29: #{tpu_custom_call.1} parent=1 // pred_fallthru
      _
    // Predicated region
    $region30: #{tpu_custom_call.1} parent=1 // pred_check
      _
    $region31: #{tpu_custom_call.1} parent=1 // pred_check_branch
      %29 = sbr.rel (0) target = $region33
    $region32: #{tpu_custom_call.1} parent=1 // pred_region
      _
    $region33: #{tpu_custom_call.1} parent=1 // pred_fallthru
      _
    %v30 = vld [vmem:[%s6] sm:$0x1]
    %v31 = vld [vmem:[%s6 + $0x1] sm:$0x1]
    %v32 = vld [vmem:[%s6 + $0x2] sm:$0x1]
    %v33 = vld [vmem:[%s6 + $0x3] sm:$0x1]
    %v34 = vld [vmem:[%s6 + $0x4] sm:$0x1]
    %v35 = vld [vmem:[%s6 + $0x5] sm:$0x1]
    %v36 = vld [vmem:[%s6 + $0x6] sm:$0x1]
    %v37 = vld [vmem:[%s6 + $0x7] sm:$0x1]
    %v38 = vld [vmem:[%s0] sm:$0xff]
    %v39 = vld [vmem:[%s0 + $0x8] sm:$0xff]
    %v40 = vld [vmem:[%s0 + $0x10] sm:$0xff]
    %v41 = vld [vmem:[%s0 + $0x18] sm:$0xff]
    %v42 = vld [vmem:[%s0 + $0x20] sm:$0xff]
    %v43 = vld [vmem:[%s0 + $0x28] sm:$0xff]
    %v44 = vld [vmem:[%s0 + $0x30] sm:$0xff]
    %v45 = vld [vmem:[%s0 + $0x38] sm:$0xff]
    %v46 = vld [vmem:[%s1] sm:$0xff]
    %v47 = vld [vmem:[%s1 + $0x8] sm:$0xff]
    %v48 = vld [vmem:[%s1 + $0x10] sm:$0xff]
    %v49 = vld [vmem:[%s1 + $0x18] sm:$0xff]
    %v50 = vlaneseq
    %v51 = vshrl.u32 %v50, 7
    %v52 = vsub.s32 0, %v51
    %v53 = vrot.slane %v30, %v52
    %vm54 = vcmask 261120
    %v56 = vsel %vm54, %v38, 0
    %v59 = vsel %vm54, %v39, 0
    %v62 = vsel %vm54, %v40, 0
    %v65 = vsel %vm54, %v41, 0
    %v68 = vsel %vm54, %v42, 0
    %v71 = vsel %vm54, %v43, 0
    %v74 = vsel %vm54, %v44, 0
    %v77 = vsel %vm54, %v45, 0
    %79 = vmatprep.subr.mxu0 0.0
    %80 = vmatpush1.msra.mxu0 %v46
    %81 = vmatprep.subr.mxu0 0.0
    %82 = vmatpush1.msra.mxu0 %v47
    %83 = vmatprep.subr.mxu0 0.0
    %84 = vmatpush1.msra.mxu0 %v48
    %85 = vmatprep.subr.mxu0 0.0
    %86 = vmatpush1.msra.mxu0 %v49
    %87 = vmatprep.subr.mxu0 0.0
    %88 = vmatpush1.msra.mxu0 0.0
    %89 = vmatprep.subr.mxu0 0.0
    %90 = vmatpush1.msra.mxu0 0.0
    %91 = vmatprep.subr.mxu0 0.0
    %92 = vmatpush1.msra.mxu0 0.0
    %93 = vmatprep.subr.mxu0 0.0
    %94 = vmatpush1.msra.mxu0 0.0
    %95 = vmatprep.subr.mxu0 0.0
    %96 = vmatpush1.msra.mxu0 0.0
    %97 = vmatprep.subr.mxu0 0.0
    %98 = vmatpush1.msra.mxu0 0.0
    %99 = vmatprep.subr.mxu0 0.0
    %100 = vmatpush1.msra.mxu0 0.0
    %101 = vmatprep.subr.mxu0 0.0
    %102 = vmatpush1.msra.mxu0 0.0
    %103 = vmatprep.subr.mxu0 0.0
    %104 = vmatpush1.msra.mxu0 0.0
    %105 = vmatprep.subr.mxu0 0.0
    %106 = vmatpush1.msra.mxu0 0.0
    %107 = vmatprep.subr.mxu0 0.0
    %108 = vmatpush1.msra.mxu0 0.0
    %109 = vmatprep.subr.mxu0 0.0
    %110 = vmatpush1.msra.mxu0 0.0
    %111 = vmatprep.subr.mxu0 0.0
    %112 = vmatpush1.msra.mxu0 0.0
    %113 = vmatprep.subr.mxu0 0.0
    %114 = vmatpush1.msra.mxu0 0.0
    %115 = vmatprep.subr.mxu0 0.0
    %116 = vmatpush1.msra.mxu0 0.0
    %117 = vmatprep.subr.mxu0 0.0
    %118 = vmatpush1.msra.mxu0 0.0
    %119 = vmatprep.subr.mxu0 0.0
    %120 = vmatpush1.msra.mxu0 0.0
    %121 = vmatprep.subr.mxu0 0.0
    %122 = vmatpush1.msra.mxu0 0.0
    %123 = vmatprep.subr.mxu0 0.0
    %124 = vmatpush1.msra.mxu0 0.0
    %125 = vmatprep.subr.mxu0 0.0
    %126 = vmatpush1.msra.mxu0 0.0
    %127 = vmatprep.subr.mxu0 0.0
    %128 = vmatpush1.msra.mxu0 0.0
    %129 = vmatprep.subr.mxu0 0.0
    %130 = vmatpush1.msra.mxu0 0.0
    %131 = vmatprep.subr.mxu0 0.0
    %132 = vmatpush1.msra.mxu0 0.0
    %133 = vmatprep.subr.mxu0 0.0
    %134 = vmatpush1.msra.mxu0 0.0
    %135 = vmatprep.subr.mxu0 0.0
    %136 = vmatpush1.msra.mxu0 0.0
    %137 = vmatprep.subr.mxu0 0.0
    %138 = vmatpush1.msra.mxu0 0.0
    %139 = vmatprep.subr.mxu0 0.0
    %140 = vmatpush1.msra.mxu0 0.0
    %141 = vmatprep.subr.mxu0 0.0
    %142 = vmatpush1.msra.mxu0 0.0
    %143 = vmatprep.mubr.f32.mxu0 0.0
    %144 = vmatmul.mubr.f32.gmra.mrb[0].mxu0 %v56
    %v145 = vpop.f32.mrb[0].mxu0
    %v146 = vadd.f32 %v53, %v145
    %v147 = vpop.f32.mrb[0].mxu0
    %148 = vmatprep.mubr.f32.mxu0 0.0
    %149 = vmatmul.mubr.f32.gmra.mrb[0].mxu0 %v59
    %v150 = vpop.f32.mrb[0].mxu0
    %v151 = vadd.f32 %v53, %v150
    %v152 = vpop.f32.mrb[0].mxu0
    %153 = vmatprep.mubr.f32.mxu0 0.0
    %154 = vmatmul.mubr.f32.gmra.mrb[0].mxu0 %v62
    %v155 = vpop.f32.mrb[0].mxu0
    %v156 = vadd.f32 %v53, %v155
    %v157 = vpop.f32.mrb[0].mxu0
    %158 = vmatprep.mubr.f32.mxu0 0.0
    %159 = vmatmul.mubr.f32.gmra.mrb[0].mxu0 %v65
    %v160 = vpop.f32.mrb[0].mxu0
    %v161 = vadd.f32 %v53, %v160
    %v162 = vpop.f32.mrb[0].mxu0
    %163 = vmatprep.mubr.f32.mxu0 0.0
    %164 = vmatmul.mubr.f32.gmra.mrb[0].mxu0 %v68
    %v165 = vpop.f32.mrb[0].mxu0
    %v166 = vadd.f32 %v53, %v165
    %v167 = vpop.f32.mrb[0].mxu0
    %168 = vmatprep.mubr.f32.mxu0 0.0
    %169 = vmatmul.mubr.f32.gmra.mrb[0].mxu0 %v71
    %v170 = vpop.f32.mrb[0].mxu0
    %v171 = vadd.f32 %v53, %v170
    %v172 = vpop.f32.mrb[0].mxu0
    %173 = vmatprep.mubr.f32.mxu0 0.0
    %174 = vmatmul.mubr.f32.gmra.mrb[0].mxu0 %v74
    %v175 = vpop.f32.mrb[0].mxu0
    %v176 = vadd.f32 %v53, %v175
    %v177 = vpop.f32.mrb[0].mxu0
    %178 = vmatprep.mubr.f32.mxu0 0.0
    %179 = vmatmul.mubr.f32.gmra.mrb[0].mxu0 %v77
    %v180 = vpop.f32.mrb[0].mxu0
    %v181 = vadd.f32 %v53, %v180
    %v182 = vpop.f32.mrb[0].mxu0
    %183 = vdwg.mxu0
    %184 = vadd.xlane.f32.xlu0 %v146
    %v185 = vpop.xlane.xlu0 %184
    %186 = vadd.xlane.f32.xlu0 %v151
    %v187 = vpop.xlane.xlu0 %186
    %188 = vadd.xlane.f32.xlu0 %v156
    %v189 = vpop.xlane.xlu0 %188
    %190 = vadd.xlane.f32.xlu0 %v161
    %v191 = vpop.xlane.xlu0 %190
    %192 = vadd.xlane.f32.xlu0 %v166
    %v193 = vpop.xlane.xlu0 %192
    %194 = vadd.xlane.f32.xlu0 %v171
    %v195 = vpop.xlane.xlu0 %194
    %196 = vadd.xlane.f32.xlu0 %v176
    %v197 = vpop.xlane.xlu0 %196
    %198 = vadd.xlane.f32.xlu0 %v181
    %v199 = vpop.xlane.xlu0 %198
    %v200 = vmul.f32 %v185, 0.0078125
    %v201 = vmul.f32 %v187, 0.0078125
    %v202 = vmul.f32 %v189, 0.0078125
    %v203 = vmul.f32 %v191, 0.0078125
    %v204 = vmul.f32 %v193, 0.0078125
    %v205 = vmul.f32 %v195, 0.0078125
    %v206 = vmul.f32 %v197, 0.0078125
    %v207 = vmul.f32 %v199, 0.0078125
    %v208 = vmul.f32 %v146, %v146
    %v209 = vmul.f32 %v151, %v151
    %v210 = vmul.f32 %v156, %v156
    %v211 = vmul.f32 %v161, %v161
    %v212 = vmul.f32 %v166, %v166
    %v213 = vmul.f32 %v171, %v171
    %v214 = vmul.f32 %v176, %v176
    %v215 = vmul.f32 %v181, %v181
    %216 = vadd.xlane.f32.xlu0 %v208
    %v217 = vpop.xlane.xlu0 %216
    %218 = vadd.xlane.f32.xlu0 %v209
    %v219 = vpop.xlane.xlu0 %218
    %220 = vadd.xlane.f32.xlu0 %v210
    %v221 = vpop.xlane.xlu0 %220
    %222 = vadd.xlane.f32.xlu0 %v211
    %v223 = vpop.xlane.xlu0 %222
    %224 = vadd.xlane.f32.xlu0 %v212
    %v225 = vpop.xlane.xlu0 %224
    %226 = vadd.xlane.f32.xlu0 %v213
    %v227 = vpop.xlane.xlu0 %226
    %228 = vadd.xlane.f32.xlu0 %v214
    %v229 = vpop.xlane.xlu0 %228
    %230 = vadd.xlane.f32.xlu0 %v215
    %v231 = vpop.xlane.xlu0 %230
    %v232 = vmul.f32 %v217, 0.0078125
    %v233 = vmul.f32 %v219, 0.0078125
    %v234 = vmul.f32 %v221, 0.0078125
    %v235 = vmul.f32 %v223, 0.0078125
    %v236 = vmul.f32 %v225, 0.0078125
    %v237 = vmul.f32 %v227, 0.0078125
    %v238 = vmul.f32 %v229, 0.0078125
    %v239 = vmul.f32 %v231, 0.0078125
    %v240 = vmul.f32 %v200, %v200
    %v241 = vmul.f32 %v201, %v201
    %v242 = vmul.f32 %v202, %v202
    %v243 = vmul.f32 %v203, %v203
    %v244 = vmul.f32 %v204, %v204
    %v245 = vmul.f32 %v205, %v205
    %v246 = vmul.f32 %v206, %v206
    %v247 = vmul.f32 %v207, %v207
    %v248 = vsub.f32 %v232, %v240
    %v249 = vsub.f32 %v233, %v241
    %v250 = vsub.f32 %v234, %v242
    %v251 = vsub.f32 %v235, %v243
    %v252 = vsub.f32 %v236, %v244
    %v253 = vsub.f32 %v237, %v245
    %v254 = vsub.f32 %v238, %v246
    %v255 = vsub.f32 %v239, %v247
    %v256 = vsub.f32 %v146, %v200
    %v257 = vsub.f32 %v151, %v201
    %v258 = vsub.f32 %v156, %v202
    %v259 = vsub.f32 %v161, %v203
    %v260 = vsub.f32 %v166, %v204
    %v261 = vsub.f32 %v171, %v205
    %v262 = vsub.f32 %v176, %v206
    %v263 = vsub.f32 %v181, %v207
    %v264 = vadd.f32 %v248, 1e-05
    %v265 = vadd.f32 %v249, 1e-05
    %v266 = vadd.f32 %v250, 1e-05
    %v267 = vadd.f32 %v251, 1e-05
    %v268 = vadd.f32 %v252, 1e-05
    %v269 = vadd.f32 %v253, 1e-05
    %v270 = vadd.f32 %v254, 1e-05
    %v271 = vadd.f32 %v255, 1e-05
    %v272 = vrsqrt.pop %v264
    %v273 = vrsqrt.pop %v265
    %v274 = vrsqrt.pop %v266
    %v275 = vrsqrt.pop %v267
    %v276 = vrsqrt.pop %v268
    %v277 = vrsqrt.pop %v269
    %v278 = vrsqrt.pop %v270
    %v279 = vrsqrt.pop %v271
    %v280 = vmul.f32 %v256, %v272
    %v281 = vmul.f32 %v257, %v273
    %v282 = vmul.f32 %v258, %v274
    %v283 = vmul.f32 %v259, %v275
    %v284 = vmul.f32 %v260, %v276
    %v285 = vmul.f32 %v261, %v277
    %v286 = vmul.f32 %v262, %v278
    %v287 = vmul.f32 %v263, %v279
    %v288 = vlaneseq
    %v289 = vshrl.u32 %v288, 7
    %v290 = vsub.s32 0, %v289
    %v291 = vrot.slane %v31, %v290
    %v292 = vmul.f32 %v280, %v291
    %v293 = vmul.f32 %v281, %v291
    %v294 = vmul.f32 %v282, %v291
    %v295 = vmul.f32 %v283, %v291
    %v296 = vmul.f32 %v284, %v291
    %v297 = vmul.f32 %v285, %v291
    %v298 = vmul.f32 %v286, %v291
    %v299 = vmul.f32 %v287, %v291
    %v300 = vlaneseq
    %v301 = vshrl.u32 %v300, 7
    %v302 = vsub.s32 0, %v301
    %v303 = vrot.slane %v32, %v302
    %v304 = vadd.f32 %v292, %v303
    %v305 = vadd.f32 %v293, %v303
    %v306 = vadd.f32 %v294, %v303
    %v307 = vadd.f32 %v295, %v303
    %v308 = vadd.f32 %v296, %v303
    %v309 = vadd.f32 %v297, %v303
    %v310 = vadd.f32 %v298, %v303
    %v311 = vadd.f32 %v299, %v303
    %v312 = vmax.f32 %v304, 0.0
    %v313 = vmax.f32 %v305, 0.0
    %v314 = vmax.f32 %v306, 0.0
    %v315 = vmax.f32 %v307, 0.0
    %v316 = vmax.f32 %v308, 0.0
    %v317 = vmax.f32 %v309, 0.0
    %v318 = vmax.f32 %v310, 0.0
    %v319 = vmax.f32 %v311, 0.0
    %v320 = vld [vmem:[%s2] sm:$0xff]
    %v321 = vld [vmem:[%s2 + $0x8] sm:$0xff]
    %v322 = vld [vmem:[%s2 + $0x10] sm:$0xff]
    %v323 = vld [vmem:[%s2 + $0x18] sm:$0xff]
    %v324 = vld [vmem:[%s2 + $0x20] sm:$0xff]
    %v325 = vld [vmem:[%s2 + $0x28] sm:$0xff]
    %v326 = vld [vmem:[%s2 + $0x30] sm:$0xff]
    %v327 = vld [vmem:[%s2 + $0x38] sm:$0xff]
    %v328 = vld [vmem:[%s2 + $0x40] sm:$0xff]
    %v329 = vld [vmem:[%s2 + $0x48] sm:$0xff]
    %v330 = vld [vmem:[%s2 + $0x50] sm:$0xff]
    %v331 = vld [vmem:[%s2 + $0x58] sm:$0xff]
    %v332 = vld [vmem:[%s2 + $0x60] sm:$0xff]
    %v333 = vld [vmem:[%s2 + $0x68] sm:$0xff]
    %v334 = vld [vmem:[%s2 + $0x70] sm:$0xff]
    %v335 = vld [vmem:[%s2 + $0x78] sm:$0xff]
    %v336 = vlaneseq
    %v337 = vshrl.u32 %v336, 7
    %v338 = vsub.s32 0, %v337
    %v339 = vrot.slane %v33, %v338
    %340 = vmatprep.subr.mxu0 0.0
    %341 = vmatpush1.msra.mxu0 %v320
    %342 = vmatprep.subr.mxu0 0.0
    %343 = vmatpush1.msra.mxu0 %v321
    %344 = vmatprep.subr.mxu0 0.0
    %345 = vmatpush1.msra.mxu0 %v322
    %346 = vmatprep.subr.mxu0 0.0
    %347 = vmatpush1.msra.mxu0 %v323
    %348 = vmatprep.subr.mxu0 0.0
    %349 = vmatpush1.msra.mxu0 %v324
    %350 = vmatprep.subr.mxu0 0.0
    %351 = vmatpush1.msra.mxu0 %v325
    %352 = vmatprep.subr.mxu0 0.0
    %353 = vmatpush1.msra.mxu0 %v326
    %354 = vmatprep.subr.mxu0 0.0
    %355 = vmatpush1.msra.mxu0 %v327
    %356 = vmatprep.subr.mxu0 0.0
    %357 = vmatpush1.msra.mxu0 %v328
    %358 = vmatprep.subr.mxu0 0.0
    %359 = vmatpush1.msra.mxu0 %v329
    %360 = vmatprep.subr.mxu0 0.0
    %361 = vmatpush1.msra.mxu0 %v330
    %362 = vmatprep.subr.mxu0 0.0
    %363 = vmatpush1.msra.mxu0 %v331
    %364 = vmatprep.subr.mxu0 0.0
    %365 = vmatpush1.msra.mxu0 %v332
    %366 = vmatprep.subr.mxu0 0.0
    %367 = vmatpush1.msra.mxu0 %v333
    %368 = vmatprep.subr.mxu0 0.0
    %369 = vmatpush1.msra.mxu0 %v334
    %370 = vmatprep.subr.mxu0 0.0
    %371 = vmatpush1.msra.mxu0 %v335
    %372 = vmatprep.subr.mxu0 0.0
    %373 = vmatpush1.msra.mxu0 0.0
    %374 = vmatprep.subr.mxu0 0.0
    %375 = vmatpush1.msra.mxu0 0.0
    %376 = vmatprep.subr.mxu0 0.0
    %377 = vmatpush1.msra.mxu0 0.0
    %378 = vmatprep.subr.mxu0 0.0
    %379 = vmatpush1.msra.mxu0 0.0
    %380 = vmatprep.subr.mxu0 0.0
    %381 = vmatpush1.msra.mxu0 0.0
    %382 = vmatprep.subr.mxu0 0.0
    %383 = vmatpush1.msra.mxu0 0.0
    %384 = vmatprep.subr.mxu0 0.0
    %385 = vmatpush1.msra.mxu0 0.0
    %386 = vmatprep.subr.mxu0 0.0
    %387 = vmatpush1.msra.mxu0 0.0
    %388 = vmatprep.subr.mxu0 0.0
    %389 = vmatpush1.msra.mxu0 0.0
    %390 = vmatprep.subr.mxu0 0.0
    %391 = vmatpush1.msra.mxu0 0.0
    %392 = vmatprep.subr.mxu0 0.0
    %393 = vmatpush1.msra.mxu0 0.0
    %394 = vmatprep.subr.mxu0 0.0
    %395 = vmatpush1.msra.mxu0 0.0
    %396 = vmatprep.subr.mxu0 0.0
    %397 = vmatpush1.msra.mxu0 0.0
    %398 = vmatprep.subr.mxu0 0.0
    %399 = vmatpush1.msra.mxu0 0.0
    %400 = vmatprep.subr.mxu0 0.0
    %401 = vmatpush1.msra.mxu0 0.0
    %402 = vmatprep.subr.mxu0 0.0
    %403 = vmatpush1.msra.mxu0 0.0
    %404 = vmatprep.mubr.f32.mxu0 0.0
    %405 = vmatmul.mubr.f32.gmra.mrb[0].mxu0 %v312
    %v406 = vpop.f32.mrb[0].mxu0
    %v407 = vadd.f32 %v339, %v406
    %v408 = vpop.f32.mrb[0].mxu0
    %409 = vmatprep.mubr.f32.mxu0 0.0
    %410 = vmatmul.mubr.f32.gmra.mrb[0].mxu0 %v313
    %v411 = vpop.f32.mrb[0].mxu0
    %v412 = vadd.f32 %v339, %v411
    %v413 = vpop.f32.mrb[0].mxu0
    %414 = vmatprep.mubr.f32.mxu0 0.0
    %415 = vmatmul.mubr.f32.gmra.mrb[0].mxu0 %v314
    %v416 = vpop.f32.mrb[0].mxu0
    %v417 = vadd.f32 %v339, %v416
    %v418 = vpop.f32.mrb[0].mxu0
    %419 = vmatprep.mubr.f32.mxu0 0.0
    %420 = vmatmul.mubr.f32.gmra.mrb[0].mxu0 %v315
    %v421 = vpop.f32.mrb[0].mxu0
    %v422 = vadd.f32 %v339, %v421
    %v423 = vpop.f32.mrb[0].mxu0
    %424 = vmatprep.mubr.f32.mxu0 0.0
    %425 = vmatmul.mubr.f32.gmra.mrb[0].mxu0 %v316
    %v426 = vpop.f32.mrb[0].mxu0
    %v427 = vadd.f32 %v339, %v426
    %v428 = vpop.f32.mrb[0].mxu0
    %429 = vmatprep.mubr.f32.mxu0 0.0
    %430 = vmatmul.mubr.f32.gmra.mrb[0].mxu0 %v317
    %v431 = vpop.f32.mrb[0].mxu0
    %v432 = vadd.f32 %v339, %v431
    %v433 = vpop.f32.mrb[0].mxu0
    %434 = vmatprep.mubr.f32.mxu0 0.0
    %435 = vmatmul.mubr.f32.gmra.mrb[0].mxu0 %v318
    %v436 = vpop.f32.mrb[0].mxu0
    %v437 = vadd.f32 %v339, %v436
    %v438 = vpop.f32.mrb[0].mxu0
    %439 = vmatprep.mubr.f32.mxu0 0.0
    %440 = vmatmul.mubr.f32.gmra.mrb[0].mxu0 %v319
    %v441 = vpop.f32.mrb[0].mxu0
    %v442 = vadd.f32 %v339, %v441
    %v443 = vpop.f32.mrb[0].mxu0
    %444 = vdwg.mxu0
    %v445 = vmax.f32 %v407, 0.0
    %v446 = vmax.f32 %v412, 0.0
    %v447 = vmax.f32 %v417, 0.0
    %v448 = vmax.f32 %v422, 0.0
    %v449 = vmax.f32 %v427, 0.0
    %v450 = vmax.f32 %v432, 0.0
    %v451 = vmax.f32 %v437, 0.0
    %v452 = vmax.f32 %v442, 0.0
    %v453 = vld [vmem:[%s3] sm:$0xff]
    %v454 = vld [vmem:[%s3 + $0x8] sm:$0xff]
    %v455 = vld [vmem:[%s3 + $0x10] sm:$0xff]
    %v456 = vld [vmem:[%s3 + $0x18] sm:$0xff]
    %v457 = vld [vmem:[%s3 + $0x20] sm:$0xff]
    %v458 = vld [vmem:[%s3 + $0x28] sm:$0xff]
    %v459 = vld [vmem:[%s3 + $0x30] sm:$0xff]
    %v460 = vld [vmem:[%s3 + $0x38] sm:$0xff]
    %v461 = vlaneseq
    %v462 = vshrl.u32 %v461, 7
    %v463 = vsub.s32 0, %v462
    %v464 = vrot.slane %v34, %v463
    %vm465 = vcmask 523264
    %v467 = vsel %vm465, %v445, 0
    %v470 = vsel %vm465, %v446, 0
    %v473 = vsel %vm465, %v447, 0
    %v476 = vsel %vm465, %v448, 0
    %v479 = vsel %vm465, %v449, 0
    %v482 = vsel %vm465, %v450, 0
    %v485 = vsel %vm465, %v451, 0
    %v488 = vsel %vm465, %v452, 0
    %490 = vmatprep.subr.mxu0 0.0
    %491 = vmatpush1.msra.mxu0 %v453
    %492 = vmatprep.subr.mxu0 0.0
    %493 = vmatpush1.msra.mxu0 %v454
    %494 = vmatprep.subr.mxu0 0.0
    %495 = vmatpush1.msra.mxu0 %v455
    %496 = vmatprep.subr.mxu0 0.0
    %497 = vmatpush1.msra.mxu0 %v456
    %498 = vmatprep.subr.mxu0 0.0
    %499 = vmatpush1.msra.mxu0 %v457
    %500 = vmatprep.subr.mxu0 0.0
    %501 = vmatpush1.msra.mxu0 %v458
    %502 = vmatprep.subr.mxu0 0.0
    %503 = vmatpush1.msra.mxu0 %v459
    %504 = vmatprep.subr.mxu0 0.0
    %505 = vmatpush1.msra.mxu0 %v460
    %506 = vmatprep.subr.mxu0 0.0
    %507 = vmatpush1.msra.mxu0 0.0
    %508 = vmatprep.subr.mxu0 0.0
    %509 = vmatpush1.msra.mxu0 0.0
    %510 = vmatprep.subr.mxu0 0.0
    %511 = vmatpush1.msra.mxu0 0.0
    %512 = vmatprep.subr.mxu0 0.0
    %513 = vmatpush1.msra.mxu0 0.0
    %514 = vmatprep.subr.mxu0 0.0
    %515 = vmatpush1.msra.mxu0 0.0
    %516 = vmatprep.subr.mxu0 0.0
    %517 = vmatpush1.msra.mxu0 0.0
    %518 = vmatprep.subr.mxu0 0.0
    %519 = vmatpush1.msra.mxu0 0.0
    %520 = vmatprep.subr.mxu0 0.0
    %521 = vmatpush1.msra.mxu0 0.0
    %522 = vmatprep.subr.mxu0 0.0
    %523 = vmatpush1.msra.mxu0 0.0
    %524 = vmatprep.subr.mxu0 0.0
    %525 = vmatpush1.msra.mxu0 0.0
    %526 = vmatprep.subr.mxu0 0.0
    %527 = vmatpush1.msra.mxu0 0.0
    %528 = vmatprep.subr.mxu0 0.0
    %529 = vmatpush1.msra.mxu0 0.0
    %530 = vmatprep.subr.mxu0 0.0
    %531 = vmatpush1.msra.mxu0 0.0
    %532 = vmatprep.subr.mxu0 0.0
    %533 = vmatpush1.msra.mxu0 0.0
    %534 = vmatprep.subr.mxu0 0.0
    %535 = vmatpush1.msra.mxu0 0.0
    %536 = vmatprep.subr.mxu0 0.0
    %537 = vmatpush1.msra.mxu0 0.0
    %538 = vmatprep.subr.mxu0 0.0
    %539 = vmatpush1.msra.mxu0 0.0
    %540 = vmatprep.subr.mxu0 0.0
    %541 = vmatpush1.msra.mxu0 0.0
    %542 = vmatprep.subr.mxu0 0.0
    %543 = vmatpush1.msra.mxu0 0.0
    %544 = vmatprep.subr.mxu0 0.0
    %545 = vmatpush1.msra.mxu0 0.0
    %546 = vmatprep.subr.mxu0 0.0
    %547 = vmatpush1.msra.mxu0 0.0
    %548 = vmatprep.subr.mxu0 0.0
    %549 = vmatpush1.msra.mxu0 0.0
    %550 = vmatprep.subr.mxu0 0.0
    %551 = vmatpush1.msra.mxu0 0.0
    %552 = vmatprep.subr.mxu0 0.0
    %553 = vmatpush1.msra.mxu0 0.0
    %554 = vmatprep.mubr.f32.mxu0 0.0
    %555 = vmatmul.mubr.f32.gmra.mrb[0].mxu0 %v467
    %v556 = vpop.f32.mrb[0].mxu0
    %v557 = vadd.f32 %v464, %v556
    %v558 = vpop.f32.mrb[0].mxu0
    %559 = vmatprep.mubr.f32.mxu0 0.0
    %560 = vmatmul.mubr.f32.gmra.mrb[0].mxu0 %v470
    %v561 = vpop.f32.mrb[0].mxu0
    %v562 = vadd.f32 %v464, %v561
    %v563 = vpop.f32.mrb[0].mxu0
    %564 = vmatprep.mubr.f32.mxu0 0.0
    %565 = vmatmul.mubr.f32.gmra.mrb[0].mxu0 %v473
    %v566 = vpop.f32.mrb[0].mxu0
    %v567 = vadd.f32 %v464, %v566
    %v568 = vpop.f32.mrb[0].mxu0
    %569 = vmatprep.mubr.f32.mxu0 0.0
    %570 = vmatmul.mubr.f32.gmra.mrb[0].mxu0 %v476
    %v571 = vpop.f32.mrb[0].mxu0
    %v572 = vadd.f32 %v464, %v571
    %v573 = vpop.f32.mrb[0].mxu0
    %574 = vmatprep.mubr.f32.mxu0 0.0
    %575 = vmatmul.mubr.f32.gmra.mrb[0].mxu0 %v479
    %v576 = vpop.f32.mrb[0].mxu0
    %v577 = vadd.f32 %v464, %v576
    %v578 = vpop.f32.mrb[0].mxu0
    %579 = vmatprep.mubr.f32.mxu0 0.0
    %580 = vmatmul.mubr.f32.gmra.mrb[0].mxu0 %v482
    %v581 = vpop.f32.mrb[0].mxu0
    %v582 = vadd.f32 %v464, %v581
    %v583 = vpop.f32.mrb[0].mxu0
    %584 = vmatprep.mubr.f32.mxu0 0.0
    %585 = vmatmul.mubr.f32.gmra.mrb[0].mxu0 %v485
    %v586 = vpop.f32.mrb[0].mxu0
    %v587 = vadd.f32 %v464, %v586
    %v588 = vpop.f32.mrb[0].mxu0
    %589 = vmatprep.mubr.f32.mxu0 0.0
    %590 = vmatmul.mubr.f32.gmra.mrb[0].mxu0 %v488
    %v591 = vpop.f32.mrb[0].mxu0
    %v592 = vadd.f32 %v464, %v591
    %v593 = vpop.f32.mrb[0].mxu0
    %594 = vdwg.mxu0
    %v595 = vmax.f32 %v557, 0.0
    %v596 = vmax.f32 %v562, 0.0
    %v597 = vmax.f32 %v567, 0.0
    %v598 = vmax.f32 %v572, 0.0
    %v599 = vmax.f32 %v577, 0.0
    %v600 = vmax.f32 %v582, 0.0
    %v601 = vmax.f32 %v587, 0.0
    %v602 = vmax.f32 %v592, 0.0
    %v603 = vld [vmem:[%s4] sm:$0xff]
    %v604 = vld [vmem:[%s4 + $0x8] sm:$0xff]
    %v605 = vld [vmem:[%s4 + $0x10] sm:$0xff]
    %v606 = vld [vmem:[%s4 + $0x18] sm:$0xff]
    %v607 = vlaneseq
    %v608 = vshrl.u32 %v607, 7
    %v609 = vsub.s32 0, %v608
    %v610 = vrot.slane %v35, %v609
    %v612 = vsel %vm54, %v595, 0
    %v615 = vsel %vm54, %v596, 0
    %v618 = vsel %vm54, %v597, 0
    %v621 = vsel %vm54, %v598, 0
    %v624 = vsel %vm54, %v599, 0
    %v627 = vsel %vm54, %v600, 0
    %v630 = vsel %vm54, %v601, 0
    %v633 = vsel %vm54, %v602, 0
    %635 = vmatprep.subr.mxu0 0.0
    %636 = vmatpush1.msra.mxu0 %v603
    %637 = vmatprep.subr.mxu0 0.0
    %638 = vmatpush1.msra.mxu0 %v604
    %639 = vmatprep.subr.mxu0 0.0
    %640 = vmatpush1.msra.mxu0 %v605
    %641 = vmatprep.subr.mxu0 0.0
    %642 = vmatpush1.msra.mxu0 %v606
    %643 = vmatprep.subr.mxu0 0.0
    %644 = vmatpush1.msra.mxu0 0.0
    %645 = vmatprep.subr.mxu0 0.0
    %646 = vmatpush1.msra.mxu0 0.0
    %647 = vmatprep.subr.mxu0 0.0
    %648 = vmatpush1.msra.mxu0 0.0
    %649 = vmatprep.subr.mxu0 0.0
    %650 = vmatpush1.msra.mxu0 0.0
    %651 = vmatprep.subr.mxu0 0.0
    %652 = vmatpush1.msra.mxu0 0.0
    %653 = vmatprep.subr.mxu0 0.0
    %654 = vmatpush1.msra.mxu0 0.0
    %655 = vmatprep.subr.mxu0 0.0
    %656 = vmatpush1.msra.mxu0 0.0
    %657 = vmatprep.subr.mxu0 0.0
    %658 = vmatpush1.msra.mxu0 0.0
    %659 = vmatprep.subr.mxu0 0.0
    %660 = vmatpush1.msra.mxu0 0.0
    %661 = vmatprep.subr.mxu0 0.0
    %662 = vmatpush1.msra.mxu0 0.0
    %663 = vmatprep.subr.mxu0 0.0
    %664 = vmatpush1.msra.mxu0 0.0
    %665 = vmatprep.subr.mxu0 0.0
    %666 = vmatpush1.msra.mxu0 0.0
    %667 = vmatprep.subr.mxu0 0.0
    %668 = vmatpush1.msra.mxu0 0.0
    %669 = vmatprep.subr.mxu0 0.0
    %670 = vmatpush1.msra.mxu0 0.0
    %671 = vmatprep.subr.mxu0 0.0
    %672 = vmatpush1.msra.mxu0 0.0
    %673 = vmatprep.subr.mxu0 0.0
    %674 = vmatpush1.msra.mxu0 0.0
    %675 = vmatprep.subr.mxu0 0.0
    %676 = vmatpush1.msra.mxu0 0.0
    %677 = vmatprep.subr.mxu0 0.0
    %678 = vmatpush1.msra.mxu0 0.0
    %679 = vmatprep.subr.mxu0 0.0
    %680 = vmatpush1.msra.mxu0 0.0
    %681 = vmatprep.subr.mxu0 0.0
    %682 = vmatpush1.msra.mxu0 0.0
    %683 = vmatprep.subr.mxu0 0.0
    %684 = vmatpush1.msra.mxu0 0.0
    %685 = vmatprep.subr.mxu0 0.0
    %686 = vmatpush1.msra.mxu0 0.0
    %687 = vmatprep.subr.mxu0 0.0
    %688 = vmatpush1.msra.mxu0 0.0
    %689 = vmatprep.subr.mxu0 0.0
    %690 = vmatpush1.msra.mxu0 0.0
    %691 = vmatprep.subr.mxu0 0.0
    %692 = vmatpush1.msra.mxu0 0.0
    %693 = vmatprep.subr.mxu0 0.0
    %694 = vmatpush1.msra.mxu0 0.0
    %695 = vmatprep.subr.mxu0 0.0
    %696 = vmatpush1.msra.mxu0 0.0
    %697 = vmatprep.subr.mxu0 0.0
    %698 = vmatpush1.msra.mxu0 0.0
    %699 = vmatprep.mubr.f32.mxu0 0.0
    %700 = vmatmul.mubr.f32.gmra.mrb[0].mxu0 %v612
    %v701 = vpop.f32.mrb[0].mxu0
    %v702 = vadd.f32 %v610, %v701
    %v703 = vpop.f32.mrb[0].mxu0
    %704 = vmatprep.mubr.f32.mxu0 0.0
    %705 = vmatmul.mubr.f32.gmra.mrb[0].mxu0 %v615
    %v706 = vpop.f32.mrb[0].mxu0
    %v707 = vadd.f32 %v610, %v706
    %v708 = vpop.f32.mrb[0].mxu0
    %709 = vmatprep.mubr.f32.mxu0 0.0
    %710 = vmatmul.mubr.f32.gmra.mrb[0].mxu0 %v618
    %v711 = vpop.f32.mrb[0].mxu0
    %v712 = vadd.f32 %v610, %v711
    %v713 = vpop.f32.mrb[0].mxu0
    %714 = vmatprep.mubr.f32.mxu0 0.0
    %715 = vmatmul.mubr.f32.gmra.mrb[0].mxu0 %v621
    %v716 = vpop.f32.mrb[0].mxu0
    %v717 = vadd.f32 %v610, %v716
    %v718 = vpop.f32.mrb[0].mxu0
    %719 = vmatprep.mubr.f32.mxu0 0.0
    %720 = vmatmul.mubr.f32.gmra.mrb[0].mxu0 %v624
    %v721 = vpop.f32.mrb[0].mxu0
    %v722 = vadd.f32 %v610, %v721
    %v723 = vpop.f32.mrb[0].mxu0
    %724 = vmatprep.mubr.f32.mxu0 0.0
    %725 = vmatmul.mubr.f32.gmra.mrb[0].mxu0 %v627
    %v726 = vpop.f32.mrb[0].mxu0
    %v727 = vadd.f32 %v610, %v726
    %v728 = vpop.f32.mrb[0].mxu0
    %729 = vmatprep.mubr.f32.mxu0 0.0
    %730 = vmatmul.mubr.f32.gmra.mrb[0].mxu0 %v630
    %v731 = vpop.f32.mrb[0].mxu0
    %v732 = vadd.f32 %v610, %v731
    %v733 = vpop.f32.mrb[0].mxu0
    %734 = vmatprep.mubr.f32.mxu0 0.0
    %735 = vmatmul.mubr.f32.gmra.mrb[0].mxu0 %v633
    %v736 = vpop.f32.mrb[0].mxu0
    %v737 = vadd.f32 %v610, %v736
    %v738 = vpop.f32.mrb[0].mxu0
    %739 = vdwg.mxu0
    %vm740 = vcmask 130048
    %v741 = vsel %vm740, %v702, 0.0
    %742 = vadd.xlane.f32.xlu0 %v741
    %v743 = vpop.xlane.xlu0 %742
    %v744 = vsel %vm740, %v707, 0.0
    %745 = vadd.xlane.f32.xlu0 %v744
    %v746 = vpop.xlane.xlu0 %745
    %v747 = vsel %vm740, %v712, 0.0
    %748 = vadd.xlane.f32.xlu0 %v747
    %v749 = vpop.xlane.xlu0 %748
    %v750 = vsel %vm740, %v717, 0.0
    %751 = vadd.xlane.f32.xlu0 %v750
    %v752 = vpop.xlane.xlu0 %751
    %v753 = vsel %vm740, %v722, 0.0
    %754 = vadd.xlane.f32.xlu0 %v753
    %v755 = vpop.xlane.xlu0 %754
    %v756 = vsel %vm740, %v727, 0.0
    %757 = vadd.xlane.f32.xlu0 %v756
    %v758 = vpop.xlane.xlu0 %757
    %v759 = vsel %vm740, %v732, 0.0
    %760 = vadd.xlane.f32.xlu0 %v759
    %v761 = vpop.xlane.xlu0 %760
    %v762 = vsel %vm740, %v737, 0.0
    %763 = vadd.xlane.f32.xlu0 %v762
    %v764 = vpop.xlane.xlu0 %763
    %v765 = vmul.f32 %v743, 0.0625
    %v766 = vmul.f32 %v746, 0.0625
    %v767 = vmul.f32 %v749, 0.0625
    %v768 = vmul.f32 %v752, 0.0625
    %v769 = vmul.f32 %v755, 0.0625
    %v770 = vmul.f32 %v758, 0.0625
    %v771 = vmul.f32 %v761, 0.0625
    %v772 = vmul.f32 %v764, 0.0625
    %v773 = vmul.f32 %v702, %v702
    %v774 = vmul.f32 %v707, %v707
    %v775 = vmul.f32 %v712, %v712
    %v776 = vmul.f32 %v717, %v717
    %v777 = vmul.f32 %v722, %v722
    %v778 = vmul.f32 %v727, %v727
    %v779 = vmul.f32 %v732, %v732
    %v780 = vmul.f32 %v737, %v737
    %v781 = vsel %vm740, %v773, 0.0
    %782 = vadd.xlane.f32.xlu0 %v781
    %v783 = vpop.xlane.xlu0 %782
    %v784 = vsel %vm740, %v774, 0.0
    %785 = vadd.xlane.f32.xlu0 %v784
    %v786 = vpop.xlane.xlu0 %785
    %v787 = vsel %vm740, %v775, 0.0
    %788 = vadd.xlane.f32.xlu0 %v787
    %v789 = vpop.xlane.xlu0 %788
    %v790 = vsel %vm740, %v776, 0.0
    %791 = vadd.xlane.f32.xlu0 %v790
    %v792 = vpop.xlane.xlu0 %791
    %v793 = vsel %vm740, %v777, 0.0
    %794 = vadd.xlane.f32.xlu0 %v793
    %v795 = vpop.xlane.xlu0 %794
    %v796 = vsel %vm740, %v778, 0.0
    %797 = vadd.xlane.f32.xlu0 %v796
    %v798 = vpop.xlane.xlu0 %797
    %v799 = vsel %vm740, %v779, 0.0
    %800 = vadd.xlane.f32.xlu0 %v799
    %v801 = vpop.xlane.xlu0 %800
    %v802 = vsel %vm740, %v780, 0.0
    %803 = vadd.xlane.f32.xlu0 %v802
    %v804 = vpop.xlane.xlu0 %803
    %v805 = vmul.f32 %v783, 0.0625
    %v806 = vmul.f32 %v786, 0.0625
    %v807 = vmul.f32 %v789, 0.0625
    %v808 = vmul.f32 %v792, 0.0625
    %v809 = vmul.f32 %v795, 0.0625
    %v810 = vmul.f32 %v798, 0.0625
    %v811 = vmul.f32 %v801, 0.0625
    %v812 = vmul.f32 %v804, 0.0625
    %v813 = vmul.f32 %v765, %v765
    %v814 = vmul.f32 %v766, %v766
    %v815 = vmul.f32 %v767, %v767
    %v816 = vmul.f32 %v768, %v768
    %v817 = vmul.f32 %v769, %v769
    %v818 = vmul.f32 %v770, %v770
    %v819 = vmul.f32 %v771, %v771
    %v820 = vmul.f32 %v772, %v772
    %v821 = vsub.f32 %v805, %v813
    %v822 = vsub.f32 %v806, %v814
    %v823 = vsub.f32 %v807, %v815
    %v824 = vsub.f32 %v808, %v816
    %v825 = vsub.f32 %v809, %v817
    %v826 = vsub.f32 %v810, %v818
    %v827 = vsub.f32 %v811, %v819
    %v828 = vsub.f32 %v812, %v820
    %v829 = vsub.f32 %v702, %v765
    %v830 = vsub.f32 %v707, %v766
    %v831 = vsub.f32 %v712, %v767
    %v832 = vsub.f32 %v717, %v768
    %v833 = vsub.f32 %v722, %v769
    %v834 = vsub.f32 %v727, %v770
    %v835 = vsub.f32 %v732, %v771
    %v836 = vsub.f32 %v737, %v772
    %v837 = vadd.f32 %v821, 1e-05
    %v838 = vadd.f32 %v822, 1e-05
    %v839 = vadd.f32 %v823, 1e-05
    %v840 = vadd.f32 %v824, 1e-05
    %v841 = vadd.f32 %v825, 1e-05
    %v842 = vadd.f32 %v826, 1e-05
    %v843 = vadd.f32 %v827, 1e-05
    %v844 = vadd.f32 %v828, 1e-05
    %v845 = vrsqrt.pop %v837
    %v846 = vrsqrt.pop %v838
    %v847 = vrsqrt.pop %v839
    %v848 = vrsqrt.pop %v840
    %v849 = vrsqrt.pop %v841
    %v850 = vrsqrt.pop %v842
    %v851 = vrsqrt.pop %v843
    %v852 = vrsqrt.pop %v844
    %v853 = vmul.f32 %v829, %v845
    %v854 = vmul.f32 %v830, %v846
    %v855 = vmul.f32 %v831, %v847
    %v856 = vmul.f32 %v832, %v848
    %v857 = vmul.f32 %v833, %v849
    %v858 = vmul.f32 %v834, %v850
    %v859 = vmul.f32 %v835, %v851
    %v860 = vmul.f32 %v836, %v852
    %v861 = vlaneseq
    %v862 = vshrl.u32 %v861, 7
    %v863 = vsub.s32 0, %v862
    %v864 = vrot.slane %v36, %v863
    %v865 = vmul.f32 %v853, %v864
    %v866 = vmul.f32 %v854, %v864
    %v867 = vmul.f32 %v855, %v864
    %v868 = vmul.f32 %v856, %v864
    %v869 = vmul.f32 %v857, %v864
    %v870 = vmul.f32 %v858, %v864
    %v871 = vmul.f32 %v859, %v864
    %v872 = vmul.f32 %v860, %v864
    %v873 = vlaneseq
    %v874 = vshrl.u32 %v873, 7
    %v875 = vsub.s32 0, %v874
    %v876 = vrot.slane %v37, %v875
    %v877 = vadd.f32 %v865, %v876
    %v878 = vadd.f32 %v866, %v876
    %v879 = vadd.f32 %v867, %v876
    %v880 = vadd.f32 %v868, %v876
    %v881 = vadd.f32 %v869, %v876
    %v882 = vadd.f32 %v870, %v876
    %v883 = vadd.f32 %v871, %v876
    %v884 = vadd.f32 %v872, %v876
    %v885 = vmax.f32 %v877, 0.0
    %v886 = vmax.f32 %v878, 0.0
    %v887 = vmax.f32 %v879, 0.0
    %v888 = vmax.f32 %v880, 0.0
    %v889 = vmax.f32 %v881, 0.0
    %v890 = vmax.f32 %v882, 0.0
    %v891 = vmax.f32 %v883, 0.0
    %v892 = vmax.f32 %v884, 0.0
    %v893 = vld [vmem:[%s5] sm:$0xff]
    %v894 = vld [vmem:[%s5 + $0x8] sm:$0xff]
    %v895 = vld [vmem:[%s5 + $0x10] sm:$0xff]
    %v896 = vld [vmem:[%s5 + $0x18] sm:$0xff]
    %v897 = vld [vmem:[%s5 + $0x20] sm:$0xff]
    %v898 = vld [vmem:[%s5 + $0x28] sm:$0xff]
    %v899 = vld [vmem:[%s5 + $0x30] sm:$0xff]
    %v900 = vld [vmem:[%s5 + $0x38] sm:$0xff]
    %v901 = vld [vmem:[%s5 + $0x40] sm:$0xff]
    %v902 = vld [vmem:[%s5 + $0x48] sm:$0xff]
    %v903 = vld [vmem:[%s5 + $0x50] sm:$0xff]
    %v904 = vld [vmem:[%s5 + $0x58] sm:$0xff]
    %v905 = vld [vmem:[%s5 + $0x60] sm:$0xff]
    %v906 = vld [vmem:[%s5 + $0x68] sm:$0xff]
    %v907 = vld [vmem:[%s5 + $0x70] sm:$0xff]
    %v908 = vld [vmem:[%s5 + $0x78] sm:$0xff]
    %v909 = vld [vmem:[%s7] sm:$0xff]
    %v910 = vld [vmem:[%s7 + $0x8] sm:$0xff]
    %v911 = vld [vmem:[%s7 + $0x10] sm:$0xff]
    %v912 = vld [vmem:[%s7 + $0x18] sm:$0xff]
    %v913 = vld [vmem:[%s7 + $0x20] sm:$0xff]
    %v914 = vld [vmem:[%s7 + $0x28] sm:$0xff]
    %v915 = vld [vmem:[%s7 + $0x30] sm:$0xff]
    %v916 = vld [vmem:[%s7 + $0x38] sm:$0xff]
    %v917 = vld [vmem:[%s7 + $0x40] sm:$0xff]
    %v918 = vld [vmem:[%s7 + $0x48] sm:$0xff]
    %v919 = vld [vmem:[%s7 + $0x50] sm:$0xff]
    %v920 = vld [vmem:[%s7 + $0x58] sm:$0xff]
    %v921 = vld [vmem:[%s7 + $0x60] sm:$0xff]
    %v922 = vld [vmem:[%s7 + $0x68] sm:$0xff]
    %v923 = vld [vmem:[%s7 + $0x70] sm:$0xff]
    %v924 = vld [vmem:[%s7 + $0x78] sm:$0xff]
    %926 = vset.pattern.permute.xlu0 0
    %927 = vperm.xlu0 %926, %v909
    %v928 = vpop.permute.xlu0 %927
    %931 = vset.pattern.permute.xlu0 0
    %932 = vperm.xlu0 %931, %v910
    %v933 = vpop.permute.xlu0 %932
    %936 = vset.pattern.permute.xlu0 0
    %937 = vperm.xlu0 %936, %v911
    %v938 = vpop.permute.xlu0 %937
    %941 = vset.pattern.permute.xlu0 0
    %942 = vperm.xlu0 %941, %v912
    %v943 = vpop.permute.xlu0 %942
    %946 = vset.pattern.permute.xlu0 0
    %947 = vperm.xlu0 %946, %v913
    %v948 = vpop.permute.xlu0 %947
    %951 = vset.pattern.permute.xlu0 0
    %952 = vperm.xlu0 %951, %v914
    %v953 = vpop.permute.xlu0 %952
    %956 = vset.pattern.permute.xlu0 0
    %957 = vperm.xlu0 %956, %v915
    %v958 = vpop.permute.xlu0 %957
    %961 = vset.pattern.permute.xlu0 0
    %962 = vperm.xlu0 %961, %v916
    %v963 = vpop.permute.xlu0 %962
    %966 = vset.pattern.permute.xlu0 0
    %967 = vperm.xlu0 %966, %v917
    %v968 = vpop.permute.xlu0 %967
    %971 = vset.pattern.permute.xlu0 0
    %972 = vperm.xlu0 %971, %v918
    %v973 = vpop.permute.xlu0 %972
    %976 = vset.pattern.permute.xlu0 0
    %977 = vperm.xlu0 %976, %v919
    %v978 = vpop.permute.xlu0 %977
    %981 = vset.pattern.permute.xlu0 0
    %982 = vperm.xlu0 %981, %v920
    %v983 = vpop.permute.xlu0 %982
    %986 = vset.pattern.permute.xlu0 0
    %987 = vperm.xlu0 %986, %v921
    %v988 = vpop.permute.xlu0 %987
    %991 = vset.pattern.permute.xlu0 0
    %992 = vperm.xlu0 %991, %v922
    %v993 = vpop.permute.xlu0 %992
    %996 = vset.pattern.permute.xlu0 0
    %997 = vperm.xlu0 %996, %v923
    %v998 = vpop.permute.xlu0 %997
    %1001 = vset.pattern.permute.xlu0 0
    %1002 = vperm.xlu0 %1001, %v924
    %v1003 = vpop.permute.xlu0 %1002
    %v1006 = vsel %vm740, %v893, 0
    %v1009 = vsel %vm740, %v894, 0
    %v1012 = vsel %vm740, %v895, 0
    %v1015 = vsel %vm740, %v896, 0
    %v1018 = vsel %vm740, %v897, 0
    %v1021 = vsel %vm740, %v898, 0
    %v1024 = vsel %vm740, %v899, 0
    %v1027 = vsel %vm740, %v900, 0
    %v1030 = vsel %vm740, %v901, 0
    %v1033 = vsel %vm740, %v902, 0
    %v1036 = vsel %vm740, %v903, 0
    %v1039 = vsel %vm740, %v904, 0
    %v1042 = vsel %vm740, %v905, 0
    %v1045 = vsel %vm740, %v906, 0
    %v1048 = vsel %vm740, %v907, 0
    %v1051 = vsel %vm740, %v908, 0
    %v1054 = vsel %vm740, %v885, 0
    %v1057 = vsel %vm740, %v886, 0
    %v1060 = vsel %vm740, %v887, 0
    %v1063 = vsel %vm740, %v888, 0
    %v1066 = vsel %vm740, %v889, 0
    %v1069 = vsel %vm740, %v890, 0
    %v1072 = vsel %vm740, %v891, 0
    %v1075 = vsel %vm740, %v892, 0
    %1077 = vmatprep.subr.mxu0 0.0
    %1078 = vmatpush1.xpose.msra.mxu0 %v1054
    %1079 = vmatprep.subr.mxu0 0.0
    %1080 = vmatpush1.xpose.msra.mxu0 %v1057
    %1081 = vmatprep.subr.mxu0 0.0
    %1082 = vmatpush1.xpose.msra.mxu0 %v1060
    %1083 = vmatprep.subr.mxu0 0.0
    %1084 = vmatpush1.xpose.msra.mxu0 %v1063
    %1085 = vmatprep.subr.mxu0 0.0
    %1086 = vmatpush1.xpose.msra.mxu0 %v1066
    %1087 = vmatprep.subr.mxu0 0.0
    %1088 = vmatpush1.xpose.msra.mxu0 %v1069
    %1089 = vmatprep.subr.mxu0 0.0
    %1090 = vmatpush1.xpose.msra.mxu0 %v1072
    %1091 = vmatprep.subr.mxu0 0.0
    %1092 = vmatpush1.xpose.msra.mxu0 %v1075
    %1093 = vmatprep.subr.mxu0 0.0
    %1094 = vmatpush1.xpose.msra.mxu0 0.0
    %1095 = vmatprep.subr.mxu0 0.0
    %1096 = vmatpush1.xpose.msra.mxu0 0.0
    %1097 = vmatprep.subr.mxu0 0.0
    %1098 = vmatpush1.xpose.msra.mxu0 0.0
    %1099 = vmatprep.subr.mxu0 0.0
    %1100 = vmatpush1.xpose.msra.mxu0 0.0
    %1101 = vmatprep.subr.mxu0 0.0
    %1102 = vmatpush1.xpose.msra.mxu0 0.0
    %1103 = vmatprep.subr.mxu0 0.0
    %1104 = vmatpush1.xpose.msra.mxu0 0.0
    %1105 = vmatprep.subr.mxu0 0.0
    %1106 = vmatpush1.xpose.msra.mxu0 0.0
    %1107 = vmatprep.subr.mxu0 0.0
    %1108 = vmatpush1.xpose.msra.mxu0 0.0
    %1109 = vmatprep.subr.mxu0 0.0
    %1110 = vmatpush1.xpose.msra.mxu0 0.0
    %1111 = vmatprep.subr.mxu0 0.0
    %1112 = vmatpush1.xpose.msra.mxu0 0.0
    %1113 = vmatprep.subr.mxu0 0.0
    %1114 = vmatpush1.xpose.msra.mxu0 0.0
    %1115 = vmatprep.subr.mxu0 0.0
    %1116 = vmatpush1.xpose.msra.mxu0 0.0
    %1117 = vmatprep.subr.mxu0 0.0
    %1118 = vmatpush1.xpose.msra.mxu0 0.0
    %1119 = vmatprep.subr.mxu0 0.0
    %1120 = vmatpush1.xpose.msra.mxu0 0.0
    %1121 = vmatprep.subr.mxu0 0.0
    %1122 = vmatpush1.xpose.msra.mxu0 0.0
    %1123 = vmatprep.subr.mxu0 0.0
    %1124 = vmatpush1.xpose.msra.mxu0 0.0
    %1125 = vmatprep.subr.mxu0 0.0
    %1126 = vmatpush1.xpose.msra.mxu0 0.0
    %1127 = vmatprep.subr.mxu0 0.0
    %1128 = vmatpush1.xpose.msra.mxu0 0.0
    %1129 = vmatprep.subr.mxu0 0.0
    %1130 = vmatpush1.xpose.msra.mxu0 0.0
    %1131 = vmatprep.subr.mxu0 0.0
    %1132 = vmatpush1.xpose.msra.mxu0 0.0
    %1133 = vmatprep.subr.mxu0 0.0
    %1134 = vmatpush1.xpose.msra.mxu0 0.0
    %1135 = vmatprep.subr.mxu0 0.0
    %1136 = vmatpush1.xpose.msra.mxu0 0.0
    %1137 = vmatprep.subr.mxu0 0.0
    %1138 = vmatpush1.xpose.msra.mxu0 0.0
    %1139 = vmatprep.subr.mxu0 0.0
    %1140 = vmatpush1.xpose.msra.mxu0 0.0
    %1141 = vmatprep.mubr.f32.mxu0 0.0
    %1142 = vmatmul.mubr.f32.gmra.mrb[0].mxu0 %v1006
    %v1143 = vpop.f32.mrb[0].mxu0
    %v1144 = vadd.f32 %v928, %v1143
    %v1145 = vpop.f32.mrb[0].mxu0
    %1146 = vmatprep.mubr.f32.mxu0 0.0
    %1147 = vmatmul.mubr.f32.gmra.mrb[0].mxu0 %v1009
    %v1148 = vpop.f32.mrb[0].mxu0
    %v1149 = vadd.f32 %v933, %v1148
    %v1150 = vpop.f32.mrb[0].mxu0
    %1151 = vmatprep.mubr.f32.mxu0 0.0
    %1152 = vmatmul.mubr.f32.gmra.mrb[0].mxu0 %v1012
    %v1153 = vpop.f32.mrb[0].mxu0
    %v1154 = vadd.f32 %v938, %v1153
    %v1155 = vpop.f32.mrb[0].mxu0
    %1156 = vmatprep.mubr.f32.mxu0 0.0
    %1157 = vmatmul.mubr.f32.gmra.mrb[0].mxu0 %v1015
    %v1158 = vpop.f32.mrb[0].mxu0
    %v1159 = vadd.f32 %v943, %v1158
    %v1160 = vpop.f32.mrb[0].mxu0
    %1161 = vmatprep.mubr.f32.mxu0 0.0
    %1162 = vmatmul.mubr.f32.gmra.mrb[0].mxu0 %v1018
    %v1163 = vpop.f32.mrb[0].mxu0
    %v1164 = vadd.f32 %v948, %v1163
    %v1165 = vpop.f32.mrb[0].mxu0
    %1166 = vmatprep.mubr.f32.mxu0 0.0
    %1167 = vmatmul.mubr.f32.gmra.mrb[0].mxu0 %v1021
    %v1168 = vpop.f32.mrb[0].mxu0
    %v1169 = vadd.f32 %v953, %v1168
    %v1170 = vpop.f32.mrb[0].mxu0
    %1171 = vmatprep.mubr.f32.mxu0 0.0
    %1172 = vmatmul.mubr.f32.gmra.mrb[0].mxu0 %v1024
    %v1173 = vpop.f32.mrb[0].mxu0
    %v1174 = vadd.f32 %v958, %v1173
    %v1175 = vpop.f32.mrb[0].mxu0
    %1176 = vmatprep.mubr.f32.mxu0 0.0
    %1177 = vmatmul.mubr.f32.gmra.mrb[0].mxu0 %v1027
    %v1178 = vpop.f32.mrb[0].mxu0
    %v1179 = vadd.f32 %v963, %v1178
    %v1180 = vpop.f32.mrb[0].mxu0
    %1181 = vmatprep.mubr.f32.mxu0 0.0
    %1182 = vmatmul.mubr.f32.gmra.mrb[0].mxu0 %v1030
    %v1183 = vpop.f32.mrb[0].mxu0
    %v1184 = vadd.f32 %v968, %v1183
    %v1185 = vpop.f32.mrb[0].mxu0
    %1186 = vmatprep.mubr.f32.mxu0 0.0
    %1187 = vmatmul.mubr.f32.gmra.mrb[0].mxu0 %v1033
    %v1188 = vpop.f32.mrb[0].mxu0
    %v1189 = vadd.f32 %v973, %v1188
    %v1190 = vpop.f32.mrb[0].mxu0
    %1191 = vmatprep.mubr.f32.mxu0 0.0
    %1192 = vmatmul.mubr.f32.gmra.mrb[0].mxu0 %v1036
    %v1193 = vpop.f32.mrb[0].mxu0
    %v1194 = vadd.f32 %v978, %v1193
    %v1195 = vpop.f32.mrb[0].mxu0
    %1196 = vmatprep.mubr.f32.mxu0 0.0
    %1197 = vmatmul.mubr.f32.gmra.mrb[0].mxu0 %v1039
    %v1198 = vpop.f32.mrb[0].mxu0
    %v1199 = vadd.f32 %v983, %v1198
    %v1200 = vpop.f32.mrb[0].mxu0
    %1201 = vmatprep.mubr.f32.mxu0 0.0
    %1202 = vmatmul.mubr.f32.gmra.mrb[0].mxu0 %v1042
    %v1203 = vpop.f32.mrb[0].mxu0
    %v1204 = vadd.f32 %v988, %v1203
    %v1205 = vpop.f32.mrb[0].mxu0
    %1206 = vmatprep.mubr.f32.mxu0 0.0
    %1207 = vmatmul.mubr.f32.gmra.mrb[0].mxu0 %v1045
    %v1208 = vpop.f32.mrb[0].mxu0
    %v1209 = vadd.f32 %v993, %v1208
    %v1210 = vpop.f32.mrb[0].mxu0
    %1211 = vmatprep.mubr.f32.mxu0 0.0
    %1212 = vmatmul.mubr.f32.gmra.mrb[0].mxu0 %v1048
    %v1213 = vpop.f32.mrb[0].mxu0
    %v1214 = vadd.f32 %v998, %v1213
    %v1215 = vpop.f32.mrb[0].mxu0
    %1216 = vmatprep.mubr.f32.mxu0 0.0
    %1217 = vmatmul.mubr.f32.gmra.mrb[0].mxu0 %v1051
    %v1218 = vpop.f32.mrb[0].mxu0
    %v1219 = vadd.f32 %v1003, %v1218
    %v1220 = vpop.f32.mrb[0].mxu0
    %1221 = vdwg.mxu0
    %v1222 = vsel %vm465, %v1144, -inf
    %v1223 = vsel %vm465, %v1149, -inf
    %v1224 = vsel %vm465, %v1154, -inf
    %v1225 = vsel %vm465, %v1159, -inf
    %v1226 = vsel %vm465, %v1164, -inf
    %v1227 = vmax.f32 %v1222, %v1226
    %v1228 = vsel %vm465, %v1169, -inf
    %v1229 = vmax.f32 %v1223, %v1228
    %v1230 = vsel %vm465, %v1174, -inf
    %v1231 = vmax.f32 %v1224, %v1230
    %v1232 = vsel %vm465, %v1179, -inf
    %v1233 = vmax.f32 %v1225, %v1232
    %v1234 = vsel %vm465, %v1184, -inf
    %v1235 = vmax.f32 %v1227, %v1234
    %v1236 = vsel %vm465, %v1189, -inf
    %v1237 = vmax.f32 %v1229, %v1236
    %v1238 = vsel %vm465, %v1194, -inf
    %v1239 = vmax.f32 %v1231, %v1238
    %v1240 = vsel %vm465, %v1199, -inf
    %v1241 = vmax.f32 %v1233, %v1240
    %v1242 = vsel %vm465, %v1204, -inf
    %v1243 = vmax.f32 %v1235, %v1242
    %v1244 = vsel %vm465, %v1209, -inf
    %v1245 = vmax.f32 %v1237, %v1244
    %v1246 = vsel %vm465, %v1214, -inf
    %v1247 = vmax.f32 %v1239, %v1246
    %v1248 = vsel %vm465, %v1219, -inf
    %v1249 = vmax.f32 %v1241, %v1248
    %v1250 = vmax.f32 %v1243, %v1245
    %v1251 = vmax.f32 %v1247, %v1249
    %v1252 = vmax.f32 %v1250, %v1251
    %v1253 = vrot.slane %v1252, 4
    %v1254 = vmax.f32 %v1252, %v1253
    %v1255 = vrot.slane %v1254, 2
    %v1256 = vmax.f32 %v1254, %v1255
    %v1257 = vrot.slane %v1256, 1
    %v1258 = vmax.f32 %v1256, %v1257
    %v1259 = vsub.f32 %v1144, %v1258
    %v1260 = vsub.f32 %v1149, %v1258
    %v1261 = vsub.f32 %v1154, %v1258
    %v1262 = vsub.f32 %v1159, %v1258
    %v1263 = vsub.f32 %v1164, %v1258
    %v1264 = vsub.f32 %v1169, %v1258
    %v1265 = vsub.f32 %v1174, %v1258
    %v1266 = vsub.f32 %v1179, %v1258
    %v1267 = vsub.f32 %v1184, %v1258
    %v1268 = vsub.f32 %v1189, %v1258
    %v1269 = vsub.f32 %v1194, %v1258
    %v1270 = vsub.f32 %v1199, %v1258
    %v1271 = vsub.f32 %v1204, %v1258
    %v1272 = vsub.f32 %v1209, %v1258
    %v1273 = vsub.f32 %v1214, %v1258
    %v1274 = vsub.f32 %v1219, %v1258
    %v1275 = vmul.f32 %v1259, 1.442695
    %v1276 = vpow.pop %v1275
    %v1277 = vmul.f32 %v1260, 1.442695
    %v1278 = vpow.pop %v1277
    %v1279 = vmul.f32 %v1261, 1.442695
    %v1280 = vpow.pop %v1279
    %v1281 = vmul.f32 %v1262, 1.442695
    %v1282 = vpow.pop %v1281
    %v1283 = vmul.f32 %v1263, 1.442695
    %v1284 = vpow.pop %v1283
    %v1285 = vmul.f32 %v1264, 1.442695
    %v1286 = vpow.pop %v1285
    %v1287 = vmul.f32 %v1265, 1.442695
    %v1288 = vpow.pop %v1287
    %v1289 = vmul.f32 %v1266, 1.442695
    %v1290 = vpow.pop %v1289
    %v1291 = vmul.f32 %v1267, 1.442695
    %v1292 = vpow.pop %v1291
    %v1293 = vmul.f32 %v1268, 1.442695
    %v1294 = vpow.pop %v1293
    %v1295 = vmul.f32 %v1269, 1.442695
    %v1296 = vpow.pop %v1295
    %v1297 = vmul.f32 %v1270, 1.442695
    %v1298 = vpow.pop %v1297
    %v1299 = vmul.f32 %v1271, 1.442695
    %v1300 = vpow.pop %v1299
    %v1301 = vmul.f32 %v1272, 1.442695
    %v1302 = vpow.pop %v1301
    %v1303 = vmul.f32 %v1273, 1.442695
    %v1304 = vpow.pop %v1303
    %v1305 = vmul.f32 %v1274, 1.442695
    %v1306 = vpow.pop %v1305
    %v1307 = vsel %vm465, %v1276, 0.0
    %v1308 = vsel %vm465, %v1278, 0.0
    %v1309 = vadd.f32 %v1307, %v1308
    %v1310 = vsel %vm465, %v1280, 0.0
    %v1311 = vadd.f32 %v1309, %v1310
    %v1312 = vsel %vm465, %v1282, 0.0
    %v1313 = vadd.f32 %v1311, %v1312
    %v1314 = vsel %vm465, %v1284, 0.0
    %v1315 = vadd.f32 %v1313, %v1314
    %v1316 = vsel %vm465, %v1286, 0.0
    %v1317 = vadd.f32 %v1315, %v1316
    %v1318 = vsel %vm465, %v1288, 0.0
    %v1319 = vadd.f32 %v1317, %v1318
    %v1320 = vsel %vm465, %v1290, 0.0
    %v1321 = vadd.f32 %v1319, %v1320
    %v1322 = vsel %vm465, %v1292, 0.0
    %v1323 = vadd.f32 %v1321, %v1322
    %v1324 = vsel %vm465, %v1294, 0.0
    %v1325 = vadd.f32 %v1323, %v1324
    %v1326 = vsel %vm465, %v1296, 0.0
    %v1327 = vadd.f32 %v1325, %v1326
    %v1328 = vsel %vm465, %v1298, 0.0
    %v1329 = vadd.f32 %v1327, %v1328
    %v1330 = vsel %vm465, %v1300, 0.0
    %v1331 = vadd.f32 %v1329, %v1330
    %v1332 = vsel %vm465, %v1302, 0.0
    %v1333 = vadd.f32 %v1331, %v1332
    %v1334 = vsel %vm465, %v1304, 0.0
    %v1335 = vadd.f32 %v1333, %v1334
    %v1336 = vsel %vm465, %v1306, 0.0
    %v1337 = vadd.f32 %v1335, %v1336
    %v1338 = vrot.slane %v1337, 4
    %v1339 = vadd.f32 %v1337, %v1338
    %v1340 = vrot.slane %v1339, 2
    %v1341 = vadd.f32 %v1339, %v1340
    %v1342 = vrot.slane %v1341, 1
    %v1343 = vadd.f32 %v1341, %v1342
    %v1344 = vrcp.pop %v1343
    %v1345 = vmul.f32 1.0, %v1344
    %v1346 = vmul.f32 %v1276, %v1345
    %vm1347 = vcmask 518144
    %1348 = vst.msk [vmem:[#allocation2] sm:$0x7] %vm1347, %v1346
    // Predicated region
    $region34: #{tpu_custom_call.1} parent=1 // pred_check
      _
    $region35: #{tpu_custom_call.1} parent=1 // pred_check_branch
      %1350 = sbr.rel (0) target = $region37
    $region36: #{tpu_custom_call.1} parent=1 // pred_region
      %s1352 = ssub.s32 64, 64
      %1353 = vsyncadd [#allocation3], %s1352
      %s1355 = sshll.u32 [#allocation2], 4
      %s1356 = int_to_ptr.vmem [resolvable:$true] %s1355
      %1358 = dma.vmem_to_hbm [thread:$0]  %s1356, 64, %s8, [#allocation3]
    $region37: #{tpu_custom_call.1} parent=1 // pred_fallthru
      _
    // Predicated region
    $region38: #{tpu_custom_call.1} parent=1 // pred_check
      _
    $region39: #{tpu_custom_call.1} parent=1 // pred_check_branch
      %1360 = sbr.rel (0) target = $region41
    $region40: #{tpu_custom_call.1} parent=1 // pred_region
      %1361 = dma.done [#allocation3], 64
    $region41: #{tpu_custom_call.1} parent=1 // pred_fallthru
      _
    %1362 = vsyncpa [#allocation3], 1

</llo_original>
